<compile_context>
chip_gen: v7x
topology: tpu7x:2x2x1
jax: 0.10.0
libtpu: 0.0.40
codegen_flags: <defaults>
</compile_context>

<pallas_src>
import functools
import math

import jax
import jax.numpy as jnp
from jax import lax
from jax.experimental import pallas as pl
from jax.experimental.pallas import tpu as pltpu

_LN_EPS = 1e-5
_GELU_C = 0.7978845608028654  # sqrt(2/pi)
_VMEM_LIMIT = 48 * 1024 * 1024  # leaves headroom inside v7x's 64 MiB physical VMEM


# --------------------------------------------------------------------------- shared math (traced)
def _bf16_dot(a, b):
    """MXU-friendly matmul: bf16 operands, f32 accumulation."""
    return jnp.dot(a.astype(jnp.bfloat16), b.astype(jnp.bfloat16),
                   preferred_element_type=jnp.float32)


def _bf16_dot_t(a, b):
    """a @ b.T (contract last dims) with bf16 operands, f32 accumulation."""
    return lax.dot_general(a.astype(jnp.bfloat16), b.astype(jnp.bfloat16),
                           (((1,), (1,)), ((), ())),
                           preferred_element_type=jnp.float32)


def _layernorm_f32(x, gamma, beta):
    mu = jnp.mean(x, axis=-1, keepdims=True)
    var = jnp.mean(jnp.square(x - mu), axis=-1, keepdims=True)
    return (x - mu) * lax.rsqrt(var + _LN_EPS) * gamma + beta


def _gelu_tanh(x):
    # TODO(synk): PyTorch nn.GELU default is the exact erf form; tanh approximation used here.
    return 0.5 * x * (1.0 + jnp.tanh(_GELU_C * (x + 0.044715 * x * x * x)))


def _silu(x):
    return x * jax.nn.sigmoid(x)


def _pick_token_tile(T, cap=512):
    """Largest multiple of 16 that divides T (<= cap); full T if T is not 16-divisible."""
    if T % 16 != 0:
        return T
    t = min(cap, T)
    t -= t % 16
    while T % t != 0:
        t -= 16
    return t


# --------------------------------------------------------------------------- kernels
def _attn_kernel(x_ref, g_ref, b_ref, wqkv_ref, wo_ref, bo_ref, o_ref, *,
                 num_heads, head_dim, scale):
    """Fused pre-LN multi-head self-attention + output projection + residual (one batch sample)."""
    x = x_ref[0].astype(jnp.float32)                                    # (N, D)
    xn = _layernorm_f32(x, g_ref[...].astype(jnp.float32), b_ref[...].astype(jnp.float32))

    hhd = num_heads * head_dim
    qkv = _bf16_dot(xn, wqkv_ref[...])                                  # single fused QKV matmul
    q = qkv[:, :hhd] * scale                                            # scale folded into q
    k = qkv[:, hhd:2 * hhd]
    v = qkv[:, 2 * hhd:]

    heads = []
    for h in range(num_heads):                                          # static unroll, small H
        sl = slice(h * head_dim, (h + 1) * head_dim)
        s = _bf16_dot_t(q[:, sl], k[:, sl])                             # (N, N)
        s = s - jnp.max(s, axis=-1, keepdims=True)
        p = jnp.exp(s)
        p = p / jnp.sum(p, axis=-1, keepdims=True)
        heads.append(_bf16_dot(p, v[:, sl]))                            # (N, Hd)
    o = jnp.concatenate(heads, axis=-1)                                 # (N, HHd)
    y = _bf16_dot(o, wo_ref[...]) + bo_ref[...].astype(jnp.float32)     # single output projection
    o_ref[0] = (x + y).astype(o_ref.dtype)
    # TODO(synk): attention mask path unused (forward is called with mask=None).
    # TODO(synk): flash-style KV tiling for long sequences not implemented (N is small here).


def _ffn_kernel(x_ref, g_ref, b_ref, w1_ref, b1_ref, w2_ref, b2_ref, o_ref):
    """Fused pre-LN dense FFN (Linear -> GELU -> Linear) + residual over a token tile."""
    x = x_ref[...].astype(jnp.float32)
    xn = _layernorm_f32(x, g_ref[...].astype(jnp.float32), b_ref[...].astype(jnp.float32))
    h = _gelu_tanh(_bf16_dot(xn, w1_ref[...]) + b1_ref[...].astype(jnp.float32))
    y = _bf16_dot(h, w2_ref[...]) + b2_ref[...].astype(jnp.float32)
    o_ref[...] = (x + y).astype(o_ref.dtype)
    # TODO(synk): tile the hidden (M) dim with an f32 accumulator for very large mlp_hidden_size.


def _moe_ln_gate_shared_kernel(x_ref, g_ref, b_ref, wg_ref, ws1_ref, bs1_ref,
                               ws2_ref, bs2_ref, xn_ref, s_ref, base_ref):
    """Pre-MoE LayerNorm + router logits + shared experts + residual, over a token tile."""
    x = x_ref[...].astype(jnp.float32)
    xn = _layernorm_f32(x, g_ref[...].astype(jnp.float32), b_ref[...].astype(jnp.float32))
    xn_ref[...] = xn.astype(jnp.bfloat16)                               # bf16 intermediate (half HBM)
    s_ref[...] = _bf16_dot(xn, wg_ref[...])                             # router logits
    hs = _silu(_bf16_dot(xn, ws1_ref[...]) + bs1_ref[...].astype(jnp.float32))
    z = _bf16_dot(hs, ws2_ref[...]) + bs2_ref[...].astype(jnp.float32)
    base_ref[...] = x + z                                               # residual + shared experts


def _moe_expert_kernel(be_ref, xg_ref, w1_ref, b1_ref, w3_ref, b3_ref, w2_ref,
                       b2_ref, o_ref):
    """Grouped expert FFN: each block of routed token rows belongs to exactly one expert.

    be_ref (scalar prefetch) drives the data-dependent expert-weight index_maps."""
    del be_ref  # only consumed by the index_maps
    xg = xg_ref[...].astype(jnp.float32)                                # (bm, D) routed rows
    a = _silu(_bf16_dot(xg, w1_ref[0]) + b1_ref[0].astype(jnp.float32))
    g = _bf16_dot(xg, w3_ref[0]) + b3_ref[0].astype(jnp.float32)
    o_ref[...] = _bf16_dot(a * g, w2_ref[0]) + b2_ref[0].astype(jnp.float32)


# --------------------------------------------------------------------------- pallas wrappers
def _attention_block(x, p, cfg):
    B, N, D = x.shape
    H, Hd = cfg["num_heads"], cfg["head_output_size"]
    HHd = H * Hd
    kernel = functools.partial(_attn_kernel, num_heads=H, head_dim=Hd,
                               scale=float(Hd) ** -0.5)
    return pl.pallas_call(
        kernel,
        out_shape=jax.ShapeDtypeStruct((B, N, D), x.dtype),
        grid_spec=pltpu.PrefetchScalarGridSpec(
            num_scalar_prefetch=0, grid=(B,),
            in_specs=[
                pl.BlockSpec((1, N, D), lambda b: (b, 0, 0)),
                pl.BlockSpec((1, D), lambda b: (0, 0)),
                pl.BlockSpec((1, D), lambda b: (0, 0)),
                pl.BlockSpec((D, 3 * HHd), lambda b: (0, 0)),
                pl.BlockSpec((HHd, D), lambda b: (0, 0)),
                pl.BlockSpec((1, D), lambda b: (0, 0)),
            ],
            out_specs=pl.BlockSpec((1, N, D), lambda b: (b, 0, 0)),
        ),
        compiler_params=pltpu.CompilerParams(
            dimension_semantics=("parallel",), vmem_limit_bytes=_VMEM_LIMIT),
    )(x, p["g1"], p["b1"], p["wqkv"], p["wo"], p["bo"])


def _dense_ffn_block(x, p):
    B, N, D = x.shape
    T = B * N
    M = p["w1"].shape[1]
    tm = _pick_token_tile(T)
    xf = x.reshape(T, D)
    out = pl.pallas_call(
        _ffn_kernel,
        out_shape=jax.ShapeDtypeStruct((T, D), x.dtype),
        grid_spec=pltpu.PrefetchScalarGridSpec(
            num_scalar_prefetch=0, grid=(T // tm,),
            in_specs=[
                pl.BlockSpec((tm, D), lambda i: (i, 0)),
                pl.BlockSpec((1, D), lambda i: (0, 0)),
                pl.BlockSpec((1, D), lambda i: (0, 0)),
                pl.BlockSpec((D, M), lambda i: (0, 0)),
                pl.BlockSpec((1, M), lambda i: (0, 0)),
                pl.BlockSpec((M, D), lambda i: (0, 0)),
                pl.BlockSpec((1, D), lambda i: (0, 0)),
            ],
            out_specs=pl.BlockSpec((tm, D), lambda i: (i, 0)),
        ),
        compiler_params=pltpu.CompilerParams(
            dimension_semantics=("parallel",), vmem_limit_bytes=_VMEM_LIMIT),
    )(xf, p["g2"], p["b2"], p["w1"], p["b1f"], p["w2"], p["b2f"])
    return out.reshape(B, N, D)


def _moe_block(x, p, cfg):
    B, N, D = x.shape
    T = B * N
    E = cfg["n_experts"]
    K = cfg["n_activated_experts"]
    Mi = p["w1s"].shape[-1]
    SI = p["ws1"].shape[-1]
    tm = _pick_token_tile(T)
    xf = x.reshape(T, D)

    # --- fused LayerNorm + router logits + shared experts + residual (token-tiled) ---
    xn_bf16, scores, base = pl.pallas_call(
        _moe_ln_gate_shared_kernel,
        out_shape=(jax.ShapeDtypeStruct((T, D), jnp.bfloat16),
                   jax.ShapeDtypeStruct((T, E), jnp.float32),
                   jax.ShapeDtypeStruct((T, D), jnp.float32)),
        grid_spec=pltpu.PrefetchScalarGridSpec(
            num_scalar_prefetch=0, grid=(T // tm,),
            in_specs=[
                pl.BlockSpec((tm, D), lambda i: (i, 0)),
                pl.BlockSpec((1, D), lambda i: (0, 0)),
                pl.BlockSpec((1, D), lambda i: (0, 0)),
                pl.BlockSpec((D, E), lambda i: (0, 0)),
                pl.BlockSpec((D, SI), lambda i: (0, 0)),
                pl.BlockSpec((1, SI), lambda i: (0, 0)),
                pl.BlockSpec((SI, D), lambda i: (0, 0)),
                pl.BlockSpec((1, D), lambda i: (0, 0)),
            ],
            out_specs=[pl.BlockSpec((tm, D), lambda i: (i, 0)),
                       pl.BlockSpec((tm, E), lambda i: (i, 0)),
                       pl.BlockSpec((tm, D), lambda i: (i, 0))],
        ),
        compiler_params=pltpu.CompilerParams(
            dimension_semantics=("parallel",), vmem_limit_bytes=_VMEM_LIMIT),
    )(xf, p["g2"], p["b2"], p["wg"], p["ws1"], p["bs1"], p["ws2"], p["bs2"])

    # --- routing in plain JAX (top-k / sort / scatter have no clean Pallas TPU equivalent) ---
    probs = jax.nn.softmax(scores, axis=-1)                 # softmax in f32 (as in the spec)
    biased = probs + p["gate_bias"][None, :]
    _, top_idx = lax.top_k(biased, K)                       # (T, K) selected experts
    top_w = jnp.take_along_axis(probs, top_idx, axis=-1)    # unbiased probs, route_scale == 1.0

    A = T * K
    expert_ids = top_idx.reshape(A).astype(jnp.int32)
    token_ids = jnp.repeat(jnp.arange(T, dtype=jnp.int32), K)
    w_flat = top_w.reshape(A)

    order = jnp.argsort(expert_ids)                         # group assignments by expert
    sorted_e = expert_ids[order]
    sorted_tok = token_ids[order]
    sorted_w = w_flat[order]

    bm = 16 if A <= 512 else 128                            # routed-row tile (multiple of 16)
    counts = jnp.bincount(expert_ids, length=E).astype(jnp.int32)
    group_start = jnp.concatenate(
        [jnp.zeros((1,), jnp.int32), jnp.cumsum(counts).astype(jnp.int32)])[:E]
    padded_counts = ((counts + bm - 1) // bm) * bm
    padded_offsets = jnp.concatenate(
        [jnp.zeros((1,), jnp.int32), jnp.cumsum(padded_counts).astype(jnp.int32)])

    L = ((A + bm - 1) // bm) * bm + E * bm                  # static worst-case padded length
    n_blocks = L // bm
    local_rank = jnp.arange(A, dtype=jnp.int32) - group_start[sorted_e]
    pos = padded_offsets[sorted_e] + local_rank             # slot of each assignment

    xg = jnp.zeros((L, D), jnp.bfloat16).at[pos].set(xn_bf16[sorted_tok])
    block_expert = jnp.clip(
        jnp.searchsorted(padded_offsets,
                         jnp.arange(n_blocks, dtype=jnp.int32) * bm, side="right") - 1,
        0, E - 1).astype(jnp.int32)

    # --- grouped expert FFN: only routed rows are computed; expert weights picked by index_map ---
    yg = pl.pallas_call(
        _moe_expert_kernel,
        out_shape=jax.ShapeDtypeStruct((L, D), jnp.float32),
        grid_spec=pltpu.PrefetchScalarGridSpec(
            num_scalar_prefetch=1, grid=(n_blocks,),
            in_specs=[
                pl.BlockSpec((bm, D), lambda i, be: (i, 0)),
                pl.BlockSpec((1, D, Mi), lambda i, be: (be[i], 0, 0)),
                pl.BlockSpec((1, 1, Mi), lambda i, be: (be[i], 0, 0)),
                pl.BlockSpec((1, D, Mi), lambda i, be: (be[i], 0, 0)),
                pl.BlockSpec((1, 1, Mi), lambda i, be: (be[i], 0, 0)),
                pl.BlockSpec((1, Mi, D), lambda i, be: (be[i], 0, 0)),
                pl.BlockSpec((1, 1, D), lambda i, be: (be[i], 0, 0)),
            ],
            out_specs=pl.BlockSpec((bm, D), lambda i, be: (i, 0)),
        ),
        compiler_params=pltpu.CompilerParams(
            dimension_semantics=("arbitrary",), vmem_limit_bytes=_VMEM_LIMIT),
    )(block_expert, xg, p["w1s"], p["b1s"], p["w3s"], p["b3s"], p["w2s"], p["b2s"])

    # --- weighted scatter-add of routed outputs onto residual + shared-expert path ---
    out = base.at[sorted_tok].add(sorted_w[:, None] * yg[pos])
    return out.reshape(B, N, D).astype(x.dtype)


def moe_transformer_decoder_forward(x, layers, cfg):
    """Inference-mode forward of MoE_TransformerDecoder (dropout / DropPath are identity)."""
    # TODO(synk): training-mode dropout / stochastic DropPath not implemented (identity at eval).
    for p in layers:
        x = _attention_block(x, p, cfg)
        if "wg" in p:
            x = _moe_block(x, p, cfg)
        else:
            x = _dense_ffn_block(x, p)
    return x


# --------------------------------------------------------------------------- params + reference
def _linear_init(key, in_dim, out_dim, bias=True):
    kw, kb = jax.random.split(key)
    bound = 1.0 / math.sqrt(in_dim)
    w = jax.random.uniform(kw, (in_dim, out_dim), jnp.float32, -bound, bound)
    b = jax.random.uniform(kb, (1, out_dim), jnp.float32, -bound, bound) if bias else None
    return w, b


def init_decoder_params(key, cfg):
    D = cfg["input_size"]
    H, Hd, M = cfg["num_heads"], cfg["head_output_size"], cfg["mlp_hidden_size"]
    HHd = H * Hd
    layers = []
    for li in range(cfg["num_layers"]):
        key, k_qkv, k_o, k_a, k_b, k_c, k_d, k_e = jax.random.split(key, 8)
        wqkv, _ = _linear_init(k_qkv, D, 3 * HHd, bias=False)
        wo, bo = _linear_init(k_o, HHd, D)
        p = dict(
            g1=jnp.ones((1, D), jnp.float32), b1=jnp.zeros((1, D), jnp.float32),
            wqkv=wqkv, wo=wo, bo=bo,
            g2=jnp.ones((1, D), jnp.float32), b2=jnp.zeros((1, D), jnp.float32),
        )
        if li < cfg["n_dense_layers"]:
            w1, b1 = _linear_init(k_a, D, M)
            w2, b2 = _linear_init(k_b, M, D)
            p.update(w1=w1, b1f=b1, w2=w2, b2f=b2)
        else:
            E = cfg["n_experts"]
            SI = cfg["n_shared_experts"] * M
            wg, _ = _linear_init(k_a, D, E, bias=False)
            gate_bias = 0.1 * jax.random.normal(k_b, (E,), jnp.float32)
            w1s, b1s, w3s, b3s, w2s, b2s = [], [], [], [], [], []
            for e in range(E):
                ke1, ke2, ke3 = jax.random.split(jax.random.fold_in(k_c, e), 3)
                w1, b1 = _linear_init(ke1, D, M)
                w3, b3 = _linear_init(ke2, D, M)
                w2, b2 = _linear_init(ke3, M, D)
                w1s.append(w1); b1s.append(b1); w3s.append(w3)
                b3s.append(b3); w2s.append(w2); b2s.append(b2)
            ws1, bs1 = _linear_init(k_d, D, SI)
            ws2, bs2 = _linear_init(k_e, SI, D)
            p.update(wg=wg, gate_bias=gate_bias,
                     w1s=jnp.stack(w1s), b1s=jnp.stack(b1s),
                     w3s=jnp.stack(w3s), b3s=jnp.stack(b3s),
                     w2s=jnp.stack(w2s), b2s=jnp.stack(b2s),
                     ws1=ws1, bs1=bs1, ws2=ws2, bs2=bs2)
        layers.append(p)
    return layers


def _reference_forward(x, layers, cfg):
    """Pure-JAX reference with the same bf16-operand / f32-accumulate matmul policy."""
    B, N, D = x.shape
    H, Hd = cfg["num_heads"], cfg["head_output_size"]
    HHd = H * Hd
    scale = float(Hd) ** -0.5
    for p in layers:
        xn = _layernorm_f32(x, p["g1"], p["b1"])
        qkv = _bf16_dot(xn.reshape(B * N, D), p["wqkv"]).reshape(B, N, 3, H, Hd)
        q = qkv[:, :, 0].transpose(0, 2, 1, 3) * scale
        k = qkv[:, :, 1].transpose(0, 2, 1, 3)
        v = qkv[:, :, 2].transpose(0, 2, 1, 3)
        s = jnp.einsum("bhnd,bhmd->bhnm", q.astype(jnp.bfloat16), k.astype(jnp.bfloat16),
                       preferred_element_type=jnp.float32)
        att = jax.nn.softmax(s, axis=-1)
        o = jnp.einsum("bhnm,bhmd->bhnd", att.astype(jnp.bfloat16), v.astype(jnp.bfloat16),
                       preferred_element_type=jnp.float32)
        o = o.transpose(0, 2, 1, 3).reshape(B * N, HHd)
        x = x + (_bf16_dot(o, p["wo"]) + p["bo"]).reshape(B, N, D)

        xf = x.reshape(B * N, D)
        xn = _layernorm_f32(xf, p["g2"], p["b2"])
        if "wg" not in p:
            h = _gelu_tanh(_bf16_dot(xn, p["w1"]) + p["b1f"])
            y = _bf16_dot(h, p["w2"]) + p["b2f"]
        else:
            E, K = cfg["n_experts"], cfg["n_activated_experts"]
            probs = jax.nn.softmax(_bf16_dot(xn, p["wg"]), axis=-1)
            _, idx = lax.top_k(probs + p["gate_bias"][None, :], K)
            w = jnp.take_along_axis(probs, idx, axis=-1)
            dense_w = jnp.zeros((B * N, E), jnp.float32).at[
                jnp.arange(B * N)[:, None], idx].set(w)
            y = _bf16_dot(_silu(_bf16_dot(xn, p["ws1"]) + p["bs1"]), p["ws2"]) + p["bs2"]
            for e in range(E):
                a = _silu(_bf16_dot(xn, p["w1s"][e]) + p["b1s"][e])
                g = _bf16_dot(xn, p["w3s"][e]) + p["b3s"][e]
                ye = _bf16_dot(a * g, p["w2s"][e]) + p["b2s"][e]
                y = y + dense_w[:, e:e + 1] * ye
        x = x + y.reshape(B, N, D)
    return x


# --------------------------------------------------------------------------- main
if __name__ == "__main__":
    import numpy as np

    cfg = dict(
        input_size=32, num_layers=2, num_heads=2, head_output_size=16,
        mlp_hidden_size=32, dropout=0.0, n_dense_layers=1,
        n_experts=4, n_activated_experts=2, n_shared_experts=1,
    )
    B, N, D = 2, 8, cfg["input_size"]

    key = jax.random.PRNGKey(0)
    kx, kp = jax.random.split(key)
    x = jax.random.normal(kx, (B, N, D), dtype=jnp.float32)
    layers = init_decoder_params(kp, cfg)

    fwd = jax.jit(functools.partial(moe_transformer_decoder_forward, cfg=cfg))
    y = jax.block_until_ready(fwd(x, layers))

    y_ref = jax.block_until_ready(_reference_forward(x, layers, cfg))
    np.testing.assert_allclose(np.asarray(y), np.asarray(y_ref), rtol=5e-3, atol=5e-3)
    assert y.shape == x.shape and np.all(np.isfinite(np.asarray(y)))

    print("KERNEL_OK")
</pallas_src>

<mosaic_0001>
module attributes {stable_mosaic.version = 11 : i64} {
  func.func private @main(%arg0: i32) attributes {dimension_semantics = [#tpu.dimension_semantics<core_parallel>], iteration_bounds = array<i64: 2>, tpu.core_type = #tpu.core_type<sc_scalar_subcore>, window_params = []} {
    return
  }
}

module attributes {stable_mosaic.version = 11 : i64} {
  func.func private @main(%arg0: i32) attributes {dimension_semantics = [#tpu.dimension_semantics<core_parallel>], iteration_bounds = array<i64: 2>, tpu.core_type = #tpu.core_type<sc_scalar_subcore>, window_params = []} {
    return
  }
}

module attributes {stable_mosaic.version = 11 : i64} {
  func.func @_moe_ln_gate_shared_kernel(%arg0: i32, %arg1: memref<16x32xf32, #tpu.memory_space<vmem>>, %arg2: memref<1x32xf32, #tpu.memory_space<vmem>>, %arg3: memref<1x32xf32, #tpu.memory_space<vmem>>, %arg4: memref<32x4xf32, #tpu.memory_space<vmem>>, %arg5: memref<32x32xf32, #tpu.memory_space<vmem>>, %arg6: memref<1x32xf32, #tpu.memory_space<vmem>>, %arg7: memref<32x32xf32, #tpu.memory_space<vmem>>, %arg8: memref<1x32xf32, #tpu.memory_space<vmem>>, %arg9: memref<16x32xbf16, #tpu.memory_space<vmem>>, %arg10: memref<16x4xf32, #tpu.memory_space<vmem>>, %arg11: memref<16x32xf32, #tpu.memory_space<vmem>>) attributes {dimension_semantics = [#tpu.dimension_semantics<parallel>], iteration_bounds = array<i64: 1>, scalar_prefetch = 0 : i64, scratch_operands = 0 : i64, tpu.core_type = #tpu.core_type<tc>, window_params = [{transform_indices = @transform_0, window_bounds = array<i64: 16, 32>}, {pipeline_mode = #tpu.pipeline_mode<synchronous>, transform_indices = @transform_1, window_bounds = array<i64: 1, 32>}, {pipeline_mode = #tpu.pipeline_mode<synchronous>, transform_indices = @transform_2, window_bounds = array<i64: 1, 32>}, {pipeline_mode = #tpu.pipeline_mode<synchronous>, transform_indices = @transform_3, window_bounds = array<i64: 32, 4>}, {pipeline_mode = #tpu.pipeline_mode<synchronous>, transform_indices = @transform_4, window_bounds = array<i64: 32, 32>}, {pipeline_mode = #tpu.pipeline_mode<synchronous>, transform_indices = @transform_5, window_bounds = array<i64: 1, 32>}, {pipeline_mode = #tpu.pipeline_mode<synchronous>, transform_indices = @transform_6, window_bounds = array<i64: 32, 32>}, {pipeline_mode = #tpu.pipeline_mode<synchronous>, transform_indices = @transform_7, window_bounds = array<i64: 1, 32>}, {transform_indices = @transform_8, window_bounds = array<i64: 16, 32>}, {transform_indices = @transform_9, window_bounds = array<i64: 16, 4>}, {transform_indices = @transform_10, window_bounds = array<i64: 16, 32>}]} {
    %c0 = arith.constant 0 : index
    %c0_0 = arith.constant 0 : index
    %0 = vector.load %arg1[%c0, %c0_0] : memref<16x32xf32, #tpu.memory_space<vmem>>, vector<16x32xf32>
    %c0_1 = arith.constant 0 : index
    %c0_2 = arith.constant 0 : index
    %1 = vector.load %arg2[%c0_1, %c0_2] : memref<1x32xf32, #tpu.memory_space<vmem>>, vector<1x32xf32>
    %c0_3 = arith.constant 0 : index
    %c0_4 = arith.constant 0 : index
    %2 = vector.load %arg3[%c0_3, %c0_4] : memref<1x32xf32, #tpu.memory_space<vmem>>, vector<1x32xf32>
    %cst = arith.constant dense<0.000000e+00> : vector<16xf32>
    %3 = vector.multi_reduction <add>, %0, %cst [1] : vector<16x32xf32> to vector<16xf32>
    %4 = vector.shape_cast %3 : vector<16xf32> to vector<16x1xf32>
    %cst_5 = arith.constant 3.200000e+01 : f32
    %5 = vector.broadcast %cst_5 : f32 to vector<16x1xf32>
    %6 = arith.divf %4, %5 : vector<16x1xf32>
    %7 = vector.broadcast %6 : vector<16x1xf32> to vector<16x32xf32>
    %8 = arith.subf %0, %7 : vector<16x32xf32>
    %9 = arith.mulf %8, %8 : vector<16x32xf32>
    %cst_6 = arith.constant dense<0.000000e+00> : vector<16xf32>
    %10 = vector.multi_reduction <add>, %9, %cst_6 [1] : vector<16x32xf32> to vector<16xf32>
    %11 = vector.shape_cast %10 : vector<16xf32> to vector<16x1xf32>
    %cst_7 = arith.constant 3.200000e+01 : f32
    %12 = vector.broadcast %cst_7 : f32 to vector<16x1xf32>
    %13 = arith.divf %11, %12 : vector<16x1xf32>
    %14 = vector.broadcast %6 : vector<16x1xf32> to vector<16x32xf32>
    %15 = arith.subf %0, %14 : vector<16x32xf32>
    %cst_8 = arith.constant 9.99999974E-6 : f32
    %16 = vector.broadcast %cst_8 : f32 to vector<16x1xf32>
    %17 = arith.addf %13, %16 : vector<16x1xf32>
    %18 = math.rsqrt %17 : vector<16x1xf32>
    %19 = vector.broadcast %18 : vector<16x1xf32> to vector<16x32xf32>
    %20 = arith.mulf %15, %19 : vector<16x32xf32>
    %21 = vector.broadcast %1 : vector<1x32xf32> to vector<16x32xf32>
    %22 = arith.mulf %20, %21 : vector<16x32xf32>
    %23 = vector.broadcast %2 : vector<1x32xf32> to vector<16x32xf32>
    %24 = arith.addf %22, %23 : vector<16x32xf32>
    %25 = arith.truncf %24 : vector<16x32xf32> to vector<16x32xbf16>
    %c0_9 = arith.constant 0 : index
    %c0_10 = arith.constant 0 : index
    %26 = vector.load %arg9[%c0_9, %c0_10] : memref<16x32xbf16, #tpu.memory_space<vmem>>, vector<16x32xbf16>
    tpu.vector_store %arg9[%c0_9, %c0_10], %25 {strides = array<i32>} : memref<16x32xbf16, #tpu.memory_space<vmem>>, vector<16x32xbf16>,
    %c0_11 = arith.constant 0 : index
    %c0_12 = arith.constant 0 : index
    %27 = vector.load %arg4[%c0_11, %c0_12] : memref<32x4xf32, #tpu.memory_space<vmem>>, vector<32x4xf32>
    %28 = arith.truncf %24 : vector<16x32xf32> to vector<16x32xbf16>
    %29 = arith.truncf %27 : vector<32x4xf32> to vector<32x4xbf16>
    %cst_13 = arith.constant dense<0.000000e+00> : vector<16x4xf32>
    %30 = tpu.matmul %28, %29, %cst_13 {dimension_numbers = #tpu.dot_dimension_numbers<[1], [0], [0], [1], [0, 0, 1, 1], [], []>} : vector<16x32xbf16>, vector<32x4xbf16>, vector<16x4xf32> -> vector<16x4xf32>
    %c0_14 = arith.constant 0 : index
    %c0_15 = arith.constant 0 : index
    %31 = vector.load %arg10[%c0_14, %c0_15] : memref<16x4xf32, #tpu.memory_space<vmem>>, vector<16x4xf32>
    tpu.vector_store %arg10[%c0_14, %c0_15], %30 {strides = array<i32>} : memref<16x4xf32, #tpu.memory_space<vmem>>, vector<16x4xf32>,
    %c0_16 = arith.constant 0 : index
    %c0_17 = arith.constant 0 : index
    %32 = vector.load %arg5[%c0_16, %c0_17] : memref<32x32xf32, #tpu.memory_space<vmem>>, vector<32x32xf32>
    %33 = arith.truncf %24 : vector<16x32xf32> to vector<16x32xbf16>
    %34 = arith.truncf %32 : vector<32x32xf32> to vector<32x32xbf16>
    %cst_18 = arith.constant dense<0.000000e+00> : vector<16x32xf32>
    %35 = tpu.matmul %33, %34, %cst_18 {dimension_numbers = #tpu.dot_dimension_numbers<[1], [0], [0], [1], [0, 0, 1, 1], [], []>} : vector<16x32xbf16>, vector<32x32xbf16>, vector<16x32xf32> -> vector<16x32xf32>
    %c0_19 = arith.constant 0 : index
    %c0_20 = arith.constant 0 : index
    %36 = vector.load %arg6[%c0_19, %c0_20] : memref<1x32xf32, #tpu.memory_space<vmem>>, vector<1x32xf32>
    %37 = vector.broadcast %36 : vector<1x32xf32> to vector<16x32xf32>
    %38 = arith.addf %35, %37 : vector<16x32xf32>
    %39 = arith.negf %38 : vector<16x32xf32>
    %40 = math.exp %39 : vector<16x32xf32>
    %cst_21 = arith.constant 1.000000e+00 : f32
    %41 = vector.broadcast %cst_21 : f32 to vector<16x32xf32>
    %42 = arith.addf %41, %40 : vector<16x32xf32>
    %43 = arith.divf %41, %42 : vector<16x32xf32>
    %44 = arith.mulf %38, %43 : vector<16x32xf32>
    %c0_22 = arith.constant 0 : index
    %c0_23 = arith.constant 0 : index
    %45 = vector.load %arg7[%c0_22, %c0_23] : memref<32x32xf32, #tpu.memory_space<vmem>>, vector<32x32xf32>
    %46 = arith.truncf %44 : vector<16x32xf32> to vector<16x32xbf16>
    %47 = arith.truncf %45 : vector<32x32xf32> to vector<32x32xbf16>
    %cst_24 = arith.constant dense<0.000000e+00> : vector<16x32xf32>
    %48 = tpu.matmul %46, %47, %cst_24 {dimension_numbers = #tpu.dot_dimension_numbers<[1], [0], [0], [1], [0, 0, 1, 1], [], []>} : vector<16x32xbf16>, vector<32x32xbf16>, vector<16x32xf32> -> vector<16x32xf32>
    %c0_25 = arith.constant 0 : index
    %c0_26 = arith.constant 0 : index
    %49 = vector.load %arg8[%c0_25, %c0_26] : memref<1x32xf32, #tpu.memory_space<vmem>>, vector<1x32xf32>
    %50 = vector.broadcast %49 : vector<1x32xf32> to vector<16x32xf32>
    %51 = arith.addf %48, %50 : vector<16x32xf32>
    %52 = arith.addf %0, %51 : vector<16x32xf32>
    %c0_27 = arith.constant 0 : index
    %c0_28 = arith.constant 0 : index
    %53 = vector.load %arg11[%c0_27, %c0_28] : memref<16x32xf32, #tpu.memory_space<vmem>>, vector<16x32xf32>
    tpu.vector_store %arg11[%c0_27, %c0_28], %52 {strides = array<i32>} : memref<16x32xf32, #tpu.memory_space<vmem>>, vector<16x32xf32>,
    return
  }
  func.func @transform_0(%arg0: i32) -> (i32, i32) {
    %c0_i32 = arith.constant 0 : i32
    %c0_i32_0 = arith.constant 0 : i32
    return %arg0, %c0_i32 : i32, i32
  }
  func.func @transform_1(%arg0: i32) -> (i32, i32) {
    %c0_i32 = arith.constant 0 : i32
    %c0_i32_0 = arith.constant 0 : i32
    %c0_i32_1 = arith.constant 0 : i32
    return %c0_i32, %c0_i32_0 : i32, i32
  }
  func.func @transform_2(%arg0: i32) -> (i32, i32) {
    %c0_i32 = arith.constant 0 : i32
    %c0_i32_0 = arith.constant 0 : i32
    %c0_i32_1 = arith.constant 0 : i32
    return %c0_i32, %c0_i32_0 : i32, i32
  }
  func.func @transform_3(%arg0: i32) -> (i32, i32) {
    %c0_i32 = arith.constant 0 : i32
    %c0_i32_0 = arith.constant 0 : i32
    %c0_i32_1 = arith.constant 0 : i32
    return %c0_i32, %c0_i32_0 : i32, i32
  }
  func.func @transform_4(%arg0: i32) -> (i32, i32) {
    %c0_i32 = arith.constant 0 : i32
    %c0_i32_0 = arith.constant 0 : i32
    %c0_i32_1 = arith.constant 0 : i32
    return %c0_i32, %c0_i32_0 : i32, i32
  }
  func.func @transform_5(%arg0: i32) -> (i32, i32) {
    %c0_i32 = arith.constant 0 : i32
    %c0_i32_0 = arith.constant 0 : i32
    %c0_i32_1 = arith.constant 0 : i32
    return %c0_i32, %c0_i32_0 : i32, i32
  }
  func.func @transform_6(%arg0: i32) -> (i32, i32) {
    %c0_i32 = arith.constant 0 : i32
    %c0_i32_0 = arith.constant 0 : i32
    %c0_i32_1 = arith.constant 0 : i32
    return %c0_i32, %c0_i32_0 : i32, i32
  }
  func.func @transform_7(%arg0: i32) -> (i32, i32) {
    %c0_i32 = arith.constant 0 : i32
    %c0_i32_0 = arith.constant 0 : i32
    %c0_i32_1 = arith.constant 0 : i32
    return %c0_i32, %c0_i32_0 : i32, i32
  }
  func.func @transform_8(%arg0: i32) -> (i32, i32) {
    %c0_i32 = arith.constant 0 : i32
    %c0_i32_0 = arith.constant 0 : i32
    return %arg0, %c0_i32 : i32, i32
  }
  func.func @transform_9(%arg0: i32) -> (i32, i32) {
    %c0_i32 = arith.constant 0 : i32
    %c0_i32_0 = arith.constant 0 : i32
    return %arg0, %c0_i32 : i32, i32
  }
  func.func @transform_10(%arg0: i32) -> (i32, i32) {
    %c0_i32 = arith.constant 0 : i32
    %c0_i32_0 = arith.constant 0 : i32
    return %arg0, %c0_i32 : i32, i32
  }
}

module attributes {stable_mosaic.version = 11 : i64} {
  func.func @_ffn_kernel(%arg0: i32, %arg1: memref<16x32xf32, #tpu.memory_space<vmem>>, %arg2: memref<1x32xf32, #tpu.memory_space<vmem>>, %arg3: memref<1x32xf32, #tpu.memory_space<vmem>>, %arg4: memref<32x32xf32, #tpu.memory_space<vmem>>, %arg5: memref<1x32xf32, #tpu.memory_space<vmem>>, %arg6: memref<32x32xf32, #tpu.memory_space<vmem>>, %arg7: memref<1x32xf32, #tpu.memory_space<vmem>>, %arg8: memref<16x32xf32, #tpu.memory_space<vmem>>) attributes {dimension_semantics = [#tpu.dimension_semantics<parallel>], iteration_bounds = array<i64: 1>, scalar_prefetch = 0 : i64, scratch_operands = 0 : i64, tpu.core_type = #tpu.core_type<tc>, window_params = [{transform_indices = @transform_0, window_bounds = array<i64: 16, 32>}, {pipeline_mode = #tpu.pipeline_mode<synchronous>, transform_indices = @transform_1, window_bounds = array<i64: 1, 32>}, {pipeline_mode = #tpu.pipeline_mode<synchronous>, transform_indices = @transform_2, window_bounds = array<i64: 1, 32>}, {pipeline_mode = #tpu.pipeline_mode<synchronous>, transform_indices = @transform_3, window_bounds = array<i64: 32, 32>}, {pipeline_mode = #tpu.pipeline_mode<synchronous>, transform_indices = @transform_4, window_bounds = array<i64: 1, 32>}, {pipeline_mode = #tpu.pipeline_mode<synchronous>, transform_indices = @transform_5, window_bounds = array<i64: 32, 32>}, {pipeline_mode = #tpu.pipeline_mode<synchronous>, transform_indices = @transform_6, window_bounds = array<i64: 1, 32>}, {transform_indices = @transform_7, window_bounds = array<i64: 16, 32>}]} {
    %c0 = arith.constant 0 : index
    %c0_0 = arith.constant 0 : index
    %0 = vector.load %arg1[%c0, %c0_0] : memref<16x32xf32, #tpu.memory_space<vmem>>, vector<16x32xf32>
    %c0_1 = arith.constant 0 : index
    %c0_2 = arith.constant 0 : index
    %1 = vector.load %arg2[%c0_1, %c0_2] : memref<1x32xf32, #tpu.memory_space<vmem>>, vector<1x32xf32>
    %c0_3 = arith.constant 0 : index
    %c0_4 = arith.constant 0 : index
    %2 = vector.load %arg3[%c0_3, %c0_4] : memref<1x32xf32, #tpu.memory_space<vmem>>, vector<1x32xf32>
    %cst = arith.constant dense<0.000000e+00> : vector<16xf32>
    %3 = vector.multi_reduction <add>, %0, %cst [1] : vector<16x32xf32> to vector<16xf32>
    %4 = vector.shape_cast %3 : vector<16xf32> to vector<16x1xf32>
    %cst_5 = arith.constant 3.200000e+01 : f32
    %5 = vector.broadcast %cst_5 : f32 to vector<16x1xf32>
    %6 = arith.divf %4, %5 : vector<16x1xf32>
    %7 = vector.broadcast %6 : vector<16x1xf32> to vector<16x32xf32>
    %8 = arith.subf %0, %7 : vector<16x32xf32>
    %9 = arith.mulf %8, %8 : vector<16x32xf32>
    %cst_6 = arith.constant dense<0.000000e+00> : vector<16xf32>
    %10 = vector.multi_reduction <add>, %9, %cst_6 [1] : vector<16x32xf32> to vector<16xf32>
    %11 = vector.shape_cast %10 : vector<16xf32> to vector<16x1xf32>
    %cst_7 = arith.constant 3.200000e+01 : f32
    %12 = vector.broadcast %cst_7 : f32 to vector<16x1xf32>
    %13 = arith.divf %11, %12 : vector<16x1xf32>
    %14 = vector.broadcast %6 : vector<16x1xf32> to vector<16x32xf32>
    %15 = arith.subf %0, %14 : vector<16x32xf32>
    %cst_8 = arith.constant 9.99999974E-6 : f32
    %16 = vector.broadcast %cst_8 : f32 to vector<16x1xf32>
    %17 = arith.addf %13, %16 : vector<16x1xf32>
    %18 = math.rsqrt %17 : vector<16x1xf32>
    %19 = vector.broadcast %18 : vector<16x1xf32> to vector<16x32xf32>
    %20 = arith.mulf %15, %19 : vector<16x32xf32>
    %21 = vector.broadcast %1 : vector<1x32xf32> to vector<16x32xf32>
    %22 = arith.mulf %20, %21 : vector<16x32xf32>
    %23 = vector.broadcast %2 : vector<1x32xf32> to vector<16x32xf32>
    %24 = arith.addf %22, %23 : vector<16x32xf32>
    %c0_9 = arith.constant 0 : index
    %c0_10 = arith.constant 0 : index
    %25 = vector.load %arg4[%c0_9, %c0_10] : memref<32x32xf32, #tpu.memory_space<vmem>>, vector<32x32xf32>
    %26 = arith.truncf %24 : vector<16x32xf32> to vector<16x32xbf16>
    %27 = arith.truncf %25 : vector<32x32xf32> to vector<32x32xbf16>
    %cst_11 = arith.constant dense<0.000000e+00> : vector<16x32xf32>
    %28 = tpu.matmul %26, %27, %cst_11 {dimension_numbers = #tpu.dot_dimension_numbers<[1], [0], [0], [1], [0, 0, 1, 1], [], []>} : vector<16x32xbf16>, vector<32x32xbf16>, vector<16x32xf32> -> vector<16x32xf32>
    %c0_12 = arith.constant 0 : index
    %c0_13 = arith.constant 0 : index
    %29 = vector.load %arg5[%c0_12, %c0_13] : memref<1x32xf32, #tpu.memory_space<vmem>>, vector<1x32xf32>
    %30 = vector.broadcast %29 : vector<1x32xf32> to vector<16x32xf32>
    %31 = arith.addf %28, %30 : vector<16x32xf32>
    %cst_14 = arith.constant 5.000000e-01 : f32
    %32 = vector.broadcast %cst_14 : f32 to vector<16x32xf32>
    %33 = arith.mulf %32, %31 : vector<16x32xf32>
    %cst_15 = arith.constant 4.471500e-02 : f32
    %34 = vector.broadcast %cst_15 : f32 to vector<16x32xf32>
    %35 = arith.mulf %34, %31 : vector<16x32xf32>
    %36 = arith.mulf %35, %31 : vector<16x32xf32>
    %37 = arith.mulf %36, %31 : vector<16x32xf32>
    %38 = arith.addf %31, %37 : vector<16x32xf32>
    %cst_16 = arith.constant 0.797884583 : f32
    %39 = vector.broadcast %cst_16 : f32 to vector<16x32xf32>
    %40 = arith.mulf %39, %38 : vector<16x32xf32>
    %41 = math.tanh %40 : vector<16x32xf32>
    %cst_17 = arith.constant 1.000000e+00 : f32
    %42 = vector.broadcast %cst_17 : f32 to vector<16x32xf32>
    %43 = arith.addf %42, %41 : vector<16x32xf32>
    %44 = arith.mulf %33, %43 : vector<16x32xf32>
    %c0_18 = arith.constant 0 : index
    %c0_19 = arith.constant 0 : index
    %45 = vector.load %arg6[%c0_18, %c0_19] : memref<32x32xf32, #tpu.memory_space<vmem>>, vector<32x32xf32>
    %46 = arith.truncf %44 : vector<16x32xf32> to vector<16x32xbf16>
    %47 = arith.truncf %45 : vector<32x32xf32> to vector<32x32xbf16>
    %cst_20 = arith.constant dense<0.000000e+00> : vector<16x32xf32>
    %48 = tpu.matmul %46, %47, %cst_20 {dimension_numbers = #tpu.dot_dimension_numbers<[1], [0], [0], [1], [0, 0, 1, 1], [], []>} : vector<16x32xbf16>, vector<32x32xbf16>, vector<16x32xf32> -> vector<16x32xf32>
    %c0_21 = arith.constant 0 : index
    %c0_22 = arith.constant 0 : index
    %49 = vector.load %arg7[%c0_21, %c0_22] : memref<1x32xf32, #tpu.memory_space<vmem>>, vector<1x32xf32>
    %50 = vector.broadcast %49 : vector<1x32xf32> to vector<16x32xf32>
    %51 = arith.addf %48, %50 : vector<16x32xf32>
    %52 = arith.addf %0, %51 : vector<16x32xf32>
    %c0_23 = arith.constant 0 : index
    %c0_24 = arith.constant 0 : index
    %53 = vector.load %arg8[%c0_23, %c0_24] : memref<16x32xf32, #tpu.memory_space<vmem>>, vector<16x32xf32>
    tpu.vector_store %arg8[%c0_23, %c0_24], %52 {strides = array<i32>} : memref<16x32xf32, #tpu.memory_space<vmem>>, vector<16x32xf32>,
    return
  }
  func.func @transform_0(%arg0: i32) -> (i32, i32) {
    %c0_i32 = arith.constant 0 : i32
    %c0_i32_0 = arith.constant 0 : i32
    return %arg0, %c0_i32 : i32, i32
  }
  func.func @transform_1(%arg0: i32) -> (i32, i32) {
    %c0_i32 = arith.constant 0 : i32
    %c0_i32_0 = arith.constant 0 : i32
    %c0_i32_1 = arith.constant 0 : i32
    return %c0_i32, %c0_i32_0 : i32, i32
  }
  func.func @transform_2(%arg0: i32) -> (i32, i32) {
    %c0_i32 = arith.constant 0 : i32
    %c0_i32_0 = arith.constant 0 : i32
    %c0_i32_1 = arith.constant 0 : i32
    return %c0_i32, %c0_i32_0 : i32, i32
  }
  func.func @transform_3(%arg0: i32) -> (i32, i32) {
    %c0_i32 = arith.constant 0 : i32
    %c0_i32_0 = arith.constant 0 : i32
    %c0_i32_1 = arith.constant 0 : i32
    return %c0_i32, %c0_i32_0 : i32, i32
  }
  func.func @transform_4(%arg0: i32) -> (i32, i32) {
    %c0_i32 = arith.constant 0 : i32
    %c0_i32_0 = arith.constant 0 : i32
    %c0_i32_1 = arith.constant 0 : i32
    return %c0_i32, %c0_i32_0 : i32, i32
  }
  func.func @transform_5(%arg0: i32) -> (i32, i32) {
    %c0_i32 = arith.constant 0 : i32
    %c0_i32_0 = arith.constant 0 : i32
    %c0_i32_1 = arith.constant 0 : i32
    return %c0_i32, %c0_i32_0 : i32, i32
  }
  func.func @transform_6(%arg0: i32) -> (i32, i32) {
    %c0_i32 = arith.constant 0 : i32
    %c0_i32_0 = arith.constant 0 : i32
    %c0_i32_1 = arith.constant 0 : i32
    return %c0_i32, %c0_i32_0 : i32, i32
  }
  func.func @transform_7(%arg0: i32) -> (i32, i32) {
    %c0_i32 = arith.constant 0 : i32
    %c0_i32_0 = arith.constant 0 : i32
    return %arg0, %c0_i32 : i32, i32
  }
}

module attributes {stable_mosaic.version = 11 : i64} {
  func.func @_attn_kernel(%arg0: i32, %arg1: memref<1x8x32xf32, #tpu.memory_space<vmem>>, %arg2: memref<1x32xf32, #tpu.memory_space<vmem>>, %arg3: memref<1x32xf32, #tpu.memory_space<vmem>>, %arg4: memref<32x96xf32, #tpu.memory_space<vmem>>, %arg5: memref<32x32xf32, #tpu.memory_space<vmem>>, %arg6: memref<1x32xf32, #tpu.memory_space<vmem>>, %arg7: memref<1x8x32xf32, #tpu.memory_space<vmem>>) attributes {dimension_semantics = [#tpu.dimension_semantics<parallel>], iteration_bounds = array<i64: 2>, scalar_prefetch = 0 : i64, scratch_operands = 0 : i64, tpu.core_type = #tpu.core_type<tc>, window_params = [{transform_indices = @transform_0, window_bounds = array<i64: 1, 8, 32>}, {pipeline_mode = #tpu.pipeline_mode<synchronous>, transform_indices = @transform_1, window_bounds = array<i64: 1, 32>}, {pipeline_mode = #tpu.pipeline_mode<synchronous>, transform_indices = @transform_2, window_bounds = array<i64: 1, 32>}, {pipeline_mode = #tpu.pipeline_mode<synchronous>, transform_indices = @transform_3, window_bounds = array<i64: 32, 96>}, {pipeline_mode = #tpu.pipeline_mode<synchronous>, transform_indices = @transform_4, window_bounds = array<i64: 32, 32>}, {pipeline_mode = #tpu.pipeline_mode<synchronous>, transform_indices = @transform_5, window_bounds = array<i64: 1, 32>}, {transform_indices = @transform_6, window_bounds = array<i64: 1, 8, 32>}]} {
    %c0 = arith.constant 0 : index
    %c0_0 = arith.constant 0 : index
    %c0_1 = arith.constant 0 : index
    %0 = vector.load %arg1[%c0, %c0_0, %c0_1] : memref<1x8x32xf32, #tpu.memory_space<vmem>>, vector<1x8x32xf32>
    %1 = vector.shape_cast %0 : vector<1x8x32xf32> to vector<8x32xf32>
    %c0_2 = arith.constant 0 : index
    %c0_3 = arith.constant 0 : index
    %2 = vector.load %arg2[%c0_2, %c0_3] : memref<1x32xf32, #tpu.memory_space<vmem>>, vector<1x32xf32>
    %c0_4 = arith.constant 0 : index
    %c0_5 = arith.constant 0 : index
    %3 = vector.load %arg3[%c0_4, %c0_5] : memref<1x32xf32, #tpu.memory_space<vmem>>, vector<1x32xf32>
    %cst = arith.constant dense<0.000000e+00> : vector<8xf32>
    %4 = vector.multi_reduction <add>, %1, %cst [1] : vector<8x32xf32> to vector<8xf32>
    %5 = vector.shape_cast %4 : vector<8xf32> to vector<8x1xf32>
    %cst_6 = arith.constant 3.200000e+01 : f32
    %6 = vector.broadcast %cst_6 : f32 to vector<8x1xf32>
    %7 = arith.divf %5, %6 : vector<8x1xf32>
    %8 = vector.broadcast %7 : vector<8x1xf32> to vector<8x32xf32>
    %9 = arith.subf %1, %8 : vector<8x32xf32>
    %10 = arith.mulf %9, %9 : vector<8x32xf32>
    %cst_7 = arith.constant dense<0.000000e+00> : vector<8xf32>
    %11 = vector.multi_reduction <add>, %10, %cst_7 [1] : vector<8x32xf32> to vector<8xf32>
    %12 = vector.shape_cast %11 : vector<8xf32> to vector<8x1xf32>
    %cst_8 = arith.constant 3.200000e+01 : f32
    %13 = vector.broadcast %cst_8 : f32 to vector<8x1xf32>
    %14 = arith.divf %12, %13 : vector<8x1xf32>
    %15 = vector.broadcast %7 : vector<8x1xf32> to vector<8x32xf32>
    %16 = arith.subf %1, %15 : vector<8x32xf32>
    %cst_9 = arith.constant 9.99999974E-6 : f32
    %17 = vector.broadcast %cst_9 : f32 to vector<8x1xf32>
    %18 = arith.addf %14, %17 : vector<8x1xf32>
    %19 = math.rsqrt %18 : vector<8x1xf32>
    %20 = vector.broadcast %19 : vector<8x1xf32> to vector<8x32xf32>
    %21 = arith.mulf %16, %20 : vector<8x32xf32>
    %22 = vector.broadcast %2 : vector<1x32xf32> to vector<8x32xf32>
    %23 = arith.mulf %21, %22 : vector<8x32xf32>
    %24 = vector.broadcast %3 : vector<1x32xf32> to vector<8x32xf32>
    %25 = arith.addf %23, %24 : vector<8x32xf32>
    %c0_10 = arith.constant 0 : index
    %c0_11 = arith.constant 0 : index
    %26 = vector.load %arg4[%c0_10, %c0_11] : memref<32x96xf32, #tpu.memory_space<vmem>>, vector<32x96xf32>
    %27 = arith.truncf %25 : vector<8x32xf32> to vector<8x32xbf16>
    %28 = arith.truncf %26 : vector<32x96xf32> to vector<32x96xbf16>
    %cst_12 = arith.constant dense<0.000000e+00> : vector<8x96xf32>
    %29 = tpu.matmul %27, %28, %cst_12 {dimension_numbers = #tpu.dot_dimension_numbers<[1], [0], [0], [1], [0, 0, 1, 1], [], []>} : vector<8x32xbf16>, vector<32x96xbf16>, vector<8x96xf32> -> vector<8x96xf32>
    %30 = vector.extract_strided_slice %29 {offsets = [0, 0], sizes = [8, 32], strides = [1, 1]} : vector<8x96xf32> to vector<8x32xf32>
    %cst_13 = arith.constant 2.500000e-01 : f32
    %31 = vector.broadcast %cst_13 : f32 to vector<8x32xf32>
    %32 = arith.mulf %30, %31 : vector<8x32xf32>
    %33 = vector.extract_strided_slice %29 {offsets = [0, 32], sizes = [8, 32], strides = [1, 1]} : vector<8x96xf32> to vector<8x32xf32>
    %34 = vector.extract_strided_slice %29 {offsets = [0, 64], sizes = [8, 32], strides = [1, 1]} : vector<8x96xf32> to vector<8x32xf32>
    %35 = vector.extract_strided_slice %32 {offsets = [0, 0], sizes = [8, 16], strides = [1, 1]} : vector<8x32xf32> to vector<8x16xf32>
    %36 = vector.extract_strided_slice %33 {offsets = [0, 0], sizes = [8, 16], strides = [1, 1]} : vector<8x32xf32> to vector<8x16xf32>
    %37 = arith.truncf %35 : vector<8x16xf32> to vector<8x16xbf16>
    %38 = arith.truncf %36 : vector<8x16xf32> to vector<8x16xbf16>
    %cst_14 = arith.constant dense<0.000000e+00> : vector<8x8xf32>
    %39 = tpu.matmul %37, %38, %cst_14 {dimension_numbers = #tpu.dot_dimension_numbers<[1], [1], [0], [0], [0, 0, 1, 0], [], []>} : vector<8x16xbf16>, vector<8x16xbf16>, vector<8x8xf32> -> vector<8x8xf32>
    %cst_15 = arith.constant dense<0xFF800000> : vector<8xf32>
    %40 = vector.multi_reduction <maximumf>, %39, %cst_15 [1] : vector<8x8xf32> to vector<8xf32>
    %41 = vector.shape_cast %40 : vector<8xf32> to vector<8x1xf32>
    %42 = vector.broadcast %41 : vector<8x1xf32> to vector<8x8xf32>
    %43 = arith.subf %39, %42 : vector<8x8xf32>
    %44 = math.exp %43 : vector<8x8xf32>
    %cst_16 = arith.constant dense<0.000000e+00> : vector<8xf32>
    %45 = vector.multi_reduction <add>, %44, %cst_16 [1] : vector<8x8xf32> to vector<8xf32>
    %46 = vector.shape_cast %45 : vector<8xf32> to vector<8x1xf32>
    %47 = vector.broadcast %46 : vector<8x1xf32> to vector<8x8xf32>
    %48 = arith.divf %44, %47 : vector<8x8xf32>
    %49 = vector.extract_strided_slice %34 {offsets = [0, 0], sizes = [8, 16], strides = [1, 1]} : vector<8x32xf32> to vector<8x16xf32>
    %50 = arith.truncf %48 : vector<8x8xf32> to vector<8x8xbf16>
    %51 = arith.truncf %49 : vector<8x16xf32> to vector<8x16xbf16>
    %cst_17 = arith.constant dense<0.000000e+00> : vector<8x16xf32>
    %52 = tpu.matmul %50, %51, %cst_17 {dimension_numbers = #tpu.dot_dimension_numbers<[1], [0], [0], [1], [0, 0, 1, 1], [], []>} : vector<8x8xbf16>, vector<8x16xbf16>, vector<8x16xf32> -> vector<8x16xf32>
    %53 = vector.extract_strided_slice %32 {offsets = [0, 16], sizes = [8, 16], strides = [1, 1]} : vector<8x32xf32> to vector<8x16xf32>
    %54 = vector.extract_strided_slice %33 {offsets = [0, 16], sizes = [8, 16], strides = [1, 1]} : vector<8x32xf32> to vector<8x16xf32>
    %55 = arith.truncf %53 : vector<8x16xf32> to vector<8x16xbf16>
    %56 = arith.truncf %54 : vector<8x16xf32> to vector<8x16xbf16>
    %cst_18 = arith.constant dense<0.000000e+00> : vector<8x8xf32>
    %57 = tpu.matmul %55, %56, %cst_18 {dimension_numbers = #tpu.dot_dimension_numbers<[1], [1], [0], [0], [0, 0, 1, 0], [], []>} : vector<8x16xbf16>, vector<8x16xbf16>, vector<8x8xf32> -> vector<8x8xf32>
    %cst_19 = arith.constant dense<0xFF800000> : vector<8xf32>
    %58 = vector.multi_reduction <maximumf>, %57, %cst_19 [1] : vector<8x8xf32> to vector<8xf32>
    %59 = vector.shape_cast %58 : vector<8xf32> to vector<8x1xf32>
    %60 = vector.broadcast %59 : vector<8x1xf32> to vector<8x8xf32>
    %61 = arith.subf %57, %60 : vector<8x8xf32>
    %62 = math.exp %61 : vector<8x8xf32>
    %cst_20 = arith.constant dense<0.000000e+00> : vector<8xf32>
    %63 = vector.multi_reduction <add>, %62, %cst_20 [1] : vector<8x8xf32> to vector<8xf32>
    %64 = vector.shape_cast %63 : vector<8xf32> to vector<8x1xf32>
    %65 = vector.broadcast %64 : vector<8x1xf32> to vector<8x8xf32>
    %66 = arith.divf %62, %65 : vector<8x8xf32>
    %67 = vector.extract_strided_slice %34 {offsets = [0, 16], sizes = [8, 16], strides = [1, 1]} : vector<8x32xf32> to vector<8x16xf32>
    %68 = arith.truncf %66 : vector<8x8xf32> to vector<8x8xbf16>
    %69 = arith.truncf %67 : vector<8x16xf32> to vector<8x16xbf16>
    %cst_21 = arith.constant dense<0.000000e+00> : vector<8x16xf32>
    %70 = tpu.matmul %68, %69, %cst_21 {dimension_numbers = #tpu.dot_dimension_numbers<[1], [0], [0], [1], [0, 0, 1, 1], [], []>} : vector<8x8xbf16>, vector<8x16xbf16>, vector<8x16xf32> -> vector<8x16xf32>
    %71 = tpu.concatenate %52, %70 in 1 : vector<8x16xf32>, vector<8x16xf32> -> vector<8x32xf32>
    %c0_22 = arith.constant 0 : index
    %c0_23 = arith.constant 0 : index
    %72 = vector.load %arg5[%c0_22, %c0_23] : memref<32x32xf32, #tpu.memory_space<vmem>>, vector<32x32xf32>
    %73 = arith.truncf %71 : vector<8x32xf32> to vector<8x32xbf16>
    %74 = arith.truncf %72 : vector<32x32xf32> to vector<32x32xbf16>
    %cst_24 = arith.constant dense<0.000000e+00> : vector<8x32xf32>
    %75 = tpu.matmul %73, %74, %cst_24 {dimension_numbers = #tpu.dot_dimension_numbers<[1], [0], [0], [1], [0, 0, 1, 1], [], []>} : vector<8x32xbf16>, vector<32x32xbf16>, vector<8x32xf32> -> vector<8x32xf32>
    %c0_25 = arith.constant 0 : index
    %c0_26 = arith.constant 0 : index
    %76 = vector.load %arg6[%c0_25, %c0_26] : memref<1x32xf32, #tpu.memory_space<vmem>>, vector<1x32xf32>
    %77 = vector.broadcast %76 : vector<1x32xf32> to vector<8x32xf32>
    %78 = arith.addf %75, %77 : vector<8x32xf32>
    %79 = arith.addf %1, %78 : vector<8x32xf32>
    %c0_27 = arith.constant 0 : index
    %c0_28 = arith.constant 0 : index
    %c0_29 = arith.constant 0 : index
    %80 = vector.load %arg7[%c0_27, %c0_28, %c0_29] : memref<1x8x32xf32, #tpu.memory_space<vmem>>, vector<1x8x32xf32>
    %81 = vector.shape_cast %80 : vector<1x8x32xf32> to vector<8x32xf32>
    %82 = vector.shape_cast %79 : vector<8x32xf32> to vector<1x8x32xf32>
    tpu.vector_store %arg7[%c0_27, %c0_28, %c0_29], %82 {strides = array<i32>} : memref<1x8x32xf32, #tpu.memory_space<vmem>>, vector<1x8x32xf32>,
    return
  }
  func.func @transform_0(%arg0: i32) -> (i32, i32, i32) {
    %c0_i32 = arith.constant 0 : i32
    %c0_i32_0 = arith.constant 0 : i32
    %c0_i32_1 = arith.constant 0 : i32
    return %arg0, %c0_i32, %c0_i32_0 : i32, i32, i32
  }
  func.func @transform_1(%arg0: i32) -> (i32, i32) {
    %c0_i32 = arith.constant 0 : i32
    %c0_i32_0 = arith.constant 0 : i32
    %c0_i32_1 = arith.constant 0 : i32
    return %c0_i32, %c0_i32_0 : i32, i32
  }
  func.func @transform_2(%arg0: i32) -> (i32, i32) {
    %c0_i32 = arith.constant 0 : i32
    %c0_i32_0 = arith.constant 0 : i32
    %c0_i32_1 = arith.constant 0 : i32
    return %c0_i32, %c0_i32_0 : i32, i32
  }
  func.func @transform_3(%arg0: i32) -> (i32, i32) {
    %c0_i32 = arith.constant 0 : i32
    %c0_i32_0 = arith.constant 0 : i32
    %c0_i32_1 = arith.constant 0 : i32
    return %c0_i32, %c0_i32_0 : i32, i32
  }
  func.func @transform_4(%arg0: i32) -> (i32, i32) {
    %c0_i32 = arith.constant 0 : i32
    %c0_i32_0 = arith.constant 0 : i32
    %c0_i32_1 = arith.constant 0 : i32
    return %c0_i32, %c0_i32_0 : i32, i32
  }
  func.func @transform_5(%arg0: i32) -> (i32, i32) {
    %c0_i32 = arith.constant 0 : i32
    %c0_i32_0 = arith.constant 0 : i32
    %c0_i32_1 = arith.constant 0 : i32
    return %c0_i32, %c0_i32_0 : i32, i32
  }
  func.func @transform_6(%arg0: i32) -> (i32, i32, i32) {
    %c0_i32 = arith.constant 0 : i32
    %c0_i32_0 = arith.constant 0 : i32
    %c0_i32_1 = arith.constant 0 : i32
    return %arg0, %c0_i32, %c0_i32_0 : i32, i32, i32
  }
}

module attributes {stable_mosaic.version = 11 : i64} {
  func.func @_moe_expert_kernel(%arg0: i32, %arg1: memref<6xi32, #tpu.memory_space<smem>>, %arg2: memref<16x32xbf16, #tpu.memory_space<vmem>>, %arg3: memref<1x32x32xf32, #tpu.memory_space<vmem>>, %arg4: memref<1x1x32xf32, #tpu.memory_space<vmem>>, %arg5: memref<1x32x32xf32, #tpu.memory_space<vmem>>, %arg6: memref<1x1x32xf32, #tpu.memory_space<vmem>>, %arg7: memref<1x32x32xf32, #tpu.memory_space<vmem>>, %arg8: memref<1x1x32xf32, #tpu.memory_space<vmem>>, %arg9: memref<16x32xf32, #tpu.memory_space<vmem>>) attributes {dimension_semantics = [#tpu.dimension_semantics<arbitrary>], iteration_bounds = array<i64: 6>, scalar_prefetch = 1 : i64, scratch_operands = 0 : i64, tpu.core_type = #tpu.core_type<tc>, window_params = [{transform_indices = @transform_0, window_bounds = array<i64: 16, 32>}, {transform_indices = @transform_1, window_bounds = array<i64: 1, 32, 32>}, {transform_indices = @transform_2, window_bounds = array<i64: 1, 1, 32>}, {transform_indices = @transform_3, window_bounds = array<i64: 1, 32, 32>}, {transform_indices = @transform_4, window_bounds = array<i64: 1, 1, 32>}, {transform_indices = @transform_5, window_bounds = array<i64: 1, 32, 32>}, {transform_indices = @transform_6, window_bounds = array<i64: 1, 1, 32>}, {transform_indices = @transform_7, window_bounds = array<i64: 16, 32>}]} {
    %c0 = arith.constant 0 : index
    %c0_0 = arith.constant 0 : index
    %0 = vector.load %arg2[%c0, %c0_0] : memref<16x32xbf16, #tpu.memory_space<vmem>>, vector<16x32xbf16>
    %1 = arith.extf %0 : vector<16x32xbf16> to vector<16x32xf32>
    %c0_1 = arith.constant 0 : index
    %c0_2 = arith.constant 0 : index
    %c0_3 = arith.constant 0 : index
    %2 = vector.load %arg3[%c0_1, %c0_2, %c0_3] : memref<1x32x32xf32, #tpu.memory_space<vmem>>, vector<1x32x32xf32>
    %3 = vector.shape_cast %2 : vector<1x32x32xf32> to vector<32x32xf32>
    %4 = arith.truncf %1 : vector<16x32xf32> to vector<16x32xbf16>
    %5 = arith.truncf %3 : vector<32x32xf32> to vector<32x32xbf16>
    %cst = arith.constant dense<0.000000e+00> : vector<16x32xf32>
    %6 = tpu.matmul %4, %5, %cst {dimension_numbers = #tpu.dot_dimension_numbers<[1], [0], [0], [1], [0, 0, 1, 1], [], []>} : vector<16x32xbf16>, vector<32x32xbf16>, vector<16x32xf32> -> vector<16x32xf32>
    %c0_4 = arith.constant 0 : index
    %c0_5 = arith.constant 0 : index
    %c0_6 = arith.constant 0 : index
    %7 = vector.load %arg4[%c0_4, %c0_5, %c0_6] : memref<1x1x32xf32, #tpu.memory_space<vmem>>, vector<1x1x32xf32>
    %8 = vector.shape_cast %7 : vector<1x1x32xf32> to vector<1x32xf32>
    %9 = vector.broadcast %8 : vector<1x32xf32> to vector<16x32xf32>
    %10 = arith.addf %6, %9 : vector<16x32xf32>
    %11 = arith.negf %10 : vector<16x32xf32>
    %12 = math.exp %11 : vector<16x32xf32>
    %cst_7 = arith.constant 1.000000e+00 : f32
    %13 = vector.broadcast %cst_7 : f32 to vector<16x32xf32>
    %14 = arith.addf %13, %12 : vector<16x32xf32>
    %15 = arith.divf %13, %14 : vector<16x32xf32>
    %16 = arith.mulf %10, %15 : vector<16x32xf32>
    %c0_8 = arith.constant 0 : index
    %c0_9 = arith.constant 0 : index
    %c0_10 = arith.constant 0 : index
    %17 = vector.load %arg5[%c0_8, %c0_9, %c0_10] : memref<1x32x32xf32, #tpu.memory_space<vmem>>, vector<1x32x32xf32>
    %18 = vector.shape_cast %17 : vector<1x32x32xf32> to vector<32x32xf32>
    %19 = arith.truncf %1 : vector<16x32xf32> to vector<16x32xbf16>
    %20 = arith.truncf %18 : vector<32x32xf32> to vector<32x32xbf16>
    %cst_11 = arith.constant dense<0.000000e+00> : vector<16x32xf32>
    %21 = tpu.matmul %19, %20, %cst_11 {dimension_numbers = #tpu.dot_dimension_numbers<[1], [0], [0], [1], [0, 0, 1, 1], [], []>} : vector<16x32xbf16>, vector<32x32xbf16>, vector<16x32xf32> -> vector<16x32xf32>
    %c0_12 = arith.constant 0 : index
    %c0_13 = arith.constant 0 : index
    %c0_14 = arith.constant 0 : index
    %22 = vector.load %arg6[%c0_12, %c0_13, %c0_14] : memref<1x1x32xf32, #tpu.memory_space<vmem>>, vector<1x1x32xf32>
    %23 = vector.shape_cast %22 : vector<1x1x32xf32> to vector<1x32xf32>
    %24 = vector.broadcast %23 : vector<1x32xf32> to vector<16x32xf32>
    %25 = arith.addf %21, %24 : vector<16x32xf32>
    %26 = arith.mulf %16, %25 : vector<16x32xf32>
    %c0_15 = arith.constant 0 : index
    %c0_16 = arith.constant 0 : index
    %c0_17 = arith.constant 0 : index
    %27 = vector.load %arg7[%c0_15, %c0_16, %c0_17] : memref<1x32x32xf32, #tpu.memory_space<vmem>>, vector<1x32x32xf32>
    %28 = vector.shape_cast %27 : vector<1x32x32xf32> to vector<32x32xf32>
    %29 = arith.truncf %26 : vector<16x32xf32> to vector<16x32xbf16>
    %30 = arith.truncf %28 : vector<32x32xf32> to vector<32x32xbf16>
    %cst_18 = arith.constant dense<0.000000e+00> : vector<16x32xf32>
    %31 = tpu.matmul %29, %30, %cst_18 {dimension_numbers = #tpu.dot_dimension_numbers<[1], [0], [0], [1], [0, 0, 1, 1], [], []>} : vector<16x32xbf16>, vector<32x32xbf16>, vector<16x32xf32> -> vector<16x32xf32>
    %c0_19 = arith.constant 0 : index
    %c0_20 = arith.constant 0 : index
    %c0_21 = arith.constant 0 : index
    %32 = vector.load %arg8[%c0_19, %c0_20, %c0_21] : memref<1x1x32xf32, #tpu.memory_space<vmem>>, vector<1x1x32xf32>
    %33 = vector.shape_cast %32 : vector<1x1x32xf32> to vector<1x32xf32>
    %34 = vector.broadcast %33 : vector<1x32xf32> to vector<16x32xf32>
    %35 = arith.addf %31, %34 : vector<16x32xf32>
    %c0_22 = arith.constant 0 : index
    %c0_23 = arith.constant 0 : index
    %36 = vector.load %arg9[%c0_22, %c0_23] : memref<16x32xf32, #tpu.memory_space<vmem>>, vector<16x32xf32>
    tpu.vector_store %arg9[%c0_22, %c0_23], %35 {strides = array<i32>} : memref<16x32xf32, #tpu.memory_space<vmem>>, vector<16x32xf32>,
    return
  }
  func.func @transform_0(%arg0: i32, %arg1: memref<6xi32, #tpu.memory_space<smem>>) -> (i32, i32) {
    %c0_i32 = arith.constant 0 : i32
    %c0_i32_0 = arith.constant 0 : i32
    return %arg0, %c0_i32 : i32, i32
  }
  func.func @transform_1(%arg0: i32, %arg1: memref<6xi32, #tpu.memory_space<smem>>) -> (i32, i32, i32) {
    %0 = arith.index_cast %arg0 : i32 to index
    %1 = memref.load %arg1[%0] : memref<6xi32, #tpu.memory_space<smem>>
    %c0_i32 = arith.constant 0 : i32
    %c0_i32_0 = arith.constant 0 : i32
    %c0_i32_1 = arith.constant 0 : i32
    return %1, %c0_i32, %c0_i32_0 : i32, i32, i32
  }
  func.func @transform_2(%arg0: i32, %arg1: memref<6xi32, #tpu.memory_space<smem>>) -> (i32, i32, i32) {
    %0 = arith.index_cast %arg0 : i32 to index
    %1 = memref.load %arg1[%0] : memref<6xi32, #tpu.memory_space<smem>>
    %c0_i32 = arith.constant 0 : i32
    %c0_i32_0 = arith.constant 0 : i32
    %c0_i32_1 = arith.constant 0 : i32
    return %1, %c0_i32, %c0_i32_0 : i32, i32, i32
  }
  func.func @transform_3(%arg0: i32, %arg1: memref<6xi32, #tpu.memory_space<smem>>) -> (i32, i32, i32) {
    %0 = arith.index_cast %arg0 : i32 to index
    %1 = memref.load %arg1[%0] : memref<6xi32, #tpu.memory_space<smem>>
    %c0_i32 = arith.constant 0 : i32
    %c0_i32_0 = arith.constant 0 : i32
    %c0_i32_1 = arith.constant 0 : i32
    return %1, %c0_i32, %c0_i32_0 : i32, i32, i32
  }
  func.func @transform_4(%arg0: i32, %arg1: memref<6xi32, #tpu.memory_space<smem>>) -> (i32, i32, i32) {
    %0 = arith.index_cast %arg0 : i32 to index
    %1 = memref.load %arg1[%0] : memref<6xi32, #tpu.memory_space<smem>>
    %c0_i32 = arith.constant 0 : i32
    %c0_i32_0 = arith.constant 0 : i32
    %c0_i32_1 = arith.constant 0 : i32
    return %1, %c0_i32, %c0_i32_0 : i32, i32, i32
  }
  func.func @transform_5(%arg0: i32, %arg1: memref<6xi32, #tpu.memory_space<smem>>) -> (i32, i32, i32) {
    %0 = arith.index_cast %arg0 : i32 to index
    %1 = memref.load %arg1[%0] : memref<6xi32, #tpu.memory_space<smem>>
    %c0_i32 = arith.constant 0 : i32
    %c0_i32_0 = arith.constant 0 : i32
    %c0_i32_1 = arith.constant 0 : i32
    return %1, %c0_i32, %c0_i32_0 : i32, i32, i32
  }
  func.func @transform_6(%arg0: i32, %arg1: memref<6xi32, #tpu.memory_space<smem>>) -> (i32, i32, i32) {
    %0 = arith.index_cast %arg0 : i32 to index
    %1 = memref.load %arg1[%0] : memref<6xi32, #tpu.memory_space<smem>>
    %c0_i32 = arith.constant 0 : i32
    %c0_i32_0 = arith.constant 0 : i32
    %c0_i32_1 = arith.constant 0 : i32
    return %1, %c0_i32, %c0_i32_0 : i32, i32, i32
  }
  func.func @transform_7(%arg0: i32, %arg1: memref<6xi32, #tpu.memory_space<smem>>) -> (i32, i32) {
    %c0_i32 = arith.constant 0 : i32
    %c0_i32_0 = arith.constant 0 : i32
    return %arg0, %c0_i32 : i32, i32
  }
}

</mosaic_0001>

<llo_original>
// kernel: moe_transformer_decoder_forward.6
$region0: #{moe_transformer_decoder_forward.6}
  #allocation0 [shape = 'u32[]', space=smem, size = 0x4, offset = 0x4, fixed_abs, tag = 'smem constant byte address 0x4 - core index']
  #allocation1 [shape = 'u32[144,128]{1,0:T(1,128)}', space=vmem, size = 0x12000, scoped, tag = 'internal scratch']
  %s0 = inlined_call_operand.vmem [shape: f32[16,32], index: 0, kind: input, shape index: {}]
  %s1 = inlined_call_operand.vmem [shape: f32[1,32], index: 1, kind: input, shape index: {}]
  %s2 = inlined_call_operand.vmem [shape: f32[1,32], index: 2, kind: input, shape index: {}]
  %s3 = inlined_call_operand.vmem [shape: f32[32,32], index: 3, kind: input, shape index: {}]
  %s4 = inlined_call_operand.vmem [shape: f32[1,32], index: 4, kind: input, shape index: {}]
  %s5 = inlined_call_operand.vmem [shape: f32[32,32], index: 5, kind: input, shape index: {}]
  %s6 = inlined_call_operand.vmem [shape: f32[1,32], index: 6, kind: input, shape index: {}]
  %s7 = inlined_call_operand.vmem [shape: f32[16,32], index: 7, kind: output, shape index: {}]
  %s8 = sld [smem:[#allocation0]]
  $region38: #{moe_transformer_decoder_forward.6} parent=0
    _
  %s10 = ssub.s32 1, %s8
  %s11 = scalar_select 0, %s10, %s8
  // Predicated region
  $region2: #{moe_transformer_decoder_forward.6} parent=0 // pred_check
    _
  $region3: #{moe_transformer_decoder_forward.6} parent=0 // pred_check_branch
    %13 = sbr.rel (0) target = $region5
  $region4: #{moe_transformer_decoder_forward.6} parent=0 // pred_region
    _
  $region5: #{moe_transformer_decoder_forward.6} parent=0 // pred_fallthru
    _
  // Predicated region
  $region6: #{moe_transformer_decoder_forward.6} parent=0 // pred_check
    _
  $region7: #{moe_transformer_decoder_forward.6} parent=0 // pred_check_branch
    %15 = sbr.rel (0) target = $region9
  $region8: #{moe_transformer_decoder_forward.6} parent=0 // pred_region
    _
  $region9: #{moe_transformer_decoder_forward.6} parent=0 // pred_fallthru
    _
  // Predicated region
  $region10: #{moe_transformer_decoder_forward.6} parent=0 // pred_check
    _
  $region11: #{moe_transformer_decoder_forward.6} parent=0 // pred_check_branch
    %17 = sbr.rel (0) target = $region13
  $region12: #{moe_transformer_decoder_forward.6} parent=0 // pred_region
    _
  $region13: #{moe_transformer_decoder_forward.6} parent=0 // pred_fallthru
    _
  // Predicated region
  $region14: #{moe_transformer_decoder_forward.6} parent=0 // pred_check
    _
  $region15: #{moe_transformer_decoder_forward.6} parent=0 // pred_check_branch
    %19 = sbr.rel (0) target = $region17
  $region16: #{moe_transformer_decoder_forward.6} parent=0 // pred_region
    _
  $region17: #{moe_transformer_decoder_forward.6} parent=0 // pred_fallthru
    _
  // Predicated region
  $region18: #{moe_transformer_decoder_forward.6} parent=0 // pred_check
    _
  $region19: #{moe_transformer_decoder_forward.6} parent=0 // pred_check_branch
    %21 = sbr.rel (0) target = $region21
  $region20: #{moe_transformer_decoder_forward.6} parent=0 // pred_region
    _
  $region21: #{moe_transformer_decoder_forward.6} parent=0 // pred_fallthru
    _
  // Predicated region
  $region22: #{moe_transformer_decoder_forward.6} parent=0 // pred_check
    _
  $region23: #{moe_transformer_decoder_forward.6} parent=0 // pred_check_branch
    %23 = sbr.rel (0) target = $region25
  $region24: #{moe_transformer_decoder_forward.6} parent=0 // pred_region
    _
  $region25: #{moe_transformer_decoder_forward.6} parent=0 // pred_fallthru
    _
  // Predicated region
  $region26: #{moe_transformer_decoder_forward.6} parent=0 // pred_check
    _
  $region27: #{moe_transformer_decoder_forward.6} parent=0 // pred_check_branch
    %25 = sbr.rel (0) target = $region29
  $region28: #{moe_transformer_decoder_forward.6} parent=0 // pred_region
    _
  $region29: #{moe_transformer_decoder_forward.6} parent=0 // pred_fallthru
    _
  %v27 = vld [vmem:[%s0] sm:$0xff]
  %v28 = vld [vmem:[%s0 + $0x8] sm:$0xff]
  %v29 = vld [vmem:[%s1] sm:$0x1]
  %v30 = vld [vmem:[%s2] sm:$0x1]
  %vm31 = vcmask 261120
  %v32 = vsel %vm31, %v27, 0.0
  %33 = vadd.xlane.f32.xlu0 %v32
  %v34 = vpop.xlane.xlu0 %33
  %v35 = vsel %vm31, %v28, 0.0
  %36 = vadd.xlane.f32.xlu0 %v35
  %v37 = vpop.xlane.xlu0 %36
  %v38 = vrcp.pop 32.0
  %v39 = vmul.f32 %v34, %v38
  %v40 = vmul.f32 %v37, %v38
  %v41 = vsub.f32 %v27, %v39
  %v42 = vsub.f32 %v28, %v40
  %v43 = vmul.f32 %v41, %v41
  %v44 = vmul.f32 %v42, %v42
  %v45 = vsel %vm31, %v43, 0.0
  %46 = vadd.xlane.f32.xlu0 %v45
  %v47 = vpop.xlane.xlu0 %46
  %v48 = vsel %vm31, %v44, 0.0
  %49 = vadd.xlane.f32.xlu0 %v48
  %v50 = vpop.xlane.xlu0 %49
  %v51 = vmul.f32 %v47, %v38
  %v52 = vmul.f32 %v50, %v38
  %v53 = vadd.f32 %v51, 1e-05
  %v54 = vadd.f32 %v52, 1e-05
  %v55 = vrsqrt.pop %v53
  %v56 = vrsqrt.pop %v54
  %v57 = vmul.f32 %v41, %v55
  %v58 = vmul.f32 %v42, %v56
  %v60 = vlaneseq
  %v61 = vshrl.u32 %v60, 7
  %v62 = vsub.s32 0, %v61
  %v63 = vrot.slane %v29, %v62
  %v65 = vmul.f32 %v57, %v63
  %v66 = vmul.f32 %v58, %v63
  %v68 = vlaneseq
  %v69 = vshrl.u32 %v68, 7
  %v70 = vsub.s32 0, %v69
  %v71 = vrot.slane %v30, %v70
  %v73 = vadd.f32 %v65, %v71
  %v74 = vadd.f32 %v66, %v71
  %v75 = vld [vmem:[%s3] sm:$0xff]
  %v76 = vld [vmem:[%s3 + $0x8] sm:$0xff]
  %v77 = vld [vmem:[%s3 + $0x10] sm:$0xff]
  %v78 = vld [vmem:[%s3 + $0x18] sm:$0xff]
  %v79 = vpack.c.bf16 %v74, %v73
  %v80 = vpack.c.bf16 %v76, %v75
  %v81 = vpack.c.bf16 %v78, %v77
  %v82 = vld [vmem:[%s4] sm:$0x1]
  %v84 = vlaneseq
  %v85 = vshrl.u32 %v84, 7
  %v86 = vsub.s32 0, %v85
  %v87 = vrot.slane %v82, %v86
  %v90 = vsel %vm31, %v79, 0
  %92 = vmatprep.subr.bf16.mxu0 0
  %93 = vmatpush1.bf16.msra.mxu0 %v80
  %94 = vmatprep.subr.bf16.mxu0 0
  %95 = vmatpush1.bf16.msra.mxu0 %v81
  %96 = vmatprep.subr.bf16.mxu0 0
  %97 = vmatpush1.bf16.msra.mxu0 0
  %98 = vmatprep.subr.bf16.mxu0 0
  %99 = vmatpush1.bf16.msra.mxu0 0
  %100 = vmatprep.subr.bf16.mxu0 0
  %101 = vmatpush1.bf16.msra.mxu0 0
  %102 = vmatprep.subr.bf16.mxu0 0
  %103 = vmatpush1.bf16.msra.mxu0 0
  %104 = vmatprep.subr.bf16.mxu0 0
  %105 = vmatpush1.bf16.msra.mxu0 0
  %106 = vmatprep.subr.bf16.mxu0 0
  %107 = vmatpush1.bf16.msra.mxu0 0
  %108 = vmatprep.subr.bf16.mxu0 0
  %109 = vmatpush1.bf16.msra.mxu0 0
  %110 = vmatprep.subr.bf16.mxu0 0
  %111 = vmatpush1.bf16.msra.mxu0 0
  %112 = vmatprep.subr.bf16.mxu0 0
  %113 = vmatpush1.bf16.msra.mxu0 0
  %114 = vmatprep.subr.bf16.mxu0 0
  %115 = vmatpush1.bf16.msra.mxu0 0
  %116 = vmatprep.subr.bf16.mxu0 0
  %117 = vmatpush1.bf16.msra.mxu0 0
  %118 = vmatprep.subr.bf16.mxu0 0
  %119 = vmatpush1.bf16.msra.mxu0 0
  %120 = vmatprep.subr.bf16.mxu0 0
  %121 = vmatpush1.bf16.msra.mxu0 0
  %122 = vmatprep.subr.bf16.mxu0 0
  %123 = vmatpush1.bf16.msra.mxu0 0
  %124 = vmatprep.mubr.bf16.mxu0 0
  %125 = vmatmul.mubr.bf16.gmra.mrb[0].mxu0 %v90
  %v126 = vpop.f32.mrb[0].mxu0
  %v127 = vadd.f32 %v87, %v126
  %v128 = vpop.f32.mrb[0].mxu0
  %v129 = vpop.f32.mrb[0].mxu0
  %v130 = vadd.f32 %v87, %v129
  %v131 = vpop.f32.mrb[0].mxu0
  %132 = vdwg.mxu0
  %v133 = vmul.f32 %v127, 0.5
  %v134 = vmul.f32 %v130, 0.5
  %v135 = vmul.f32 %v127, 0.044715
  %v136 = vmul.f32 %v130, 0.044715
  %v137 = vmul.f32 %v135, %v127
  %v138 = vmul.f32 %v136, %v130
  %v139 = vmul.f32 %v137, %v127
  %v140 = vmul.f32 %v138, %v130
  %v141 = vadd.f32 %v127, %v139
  %v142 = vadd.f32 %v130, %v140
  %v143 = vmul.f32 %v141, 0.7978846
  %v144 = vmul.f32 %v142, 0.7978846
  %v145 = vtanh.pop %v143
  %v146 = vtanh.pop %v144
  %v147 = vadd.f32 %v145, 1.0
  %v148 = vadd.f32 %v146, 1.0
  %v149 = vmul.f32 %v133, %v147
  %v150 = vmul.f32 %v134, %v148
  %v151 = vld [vmem:[%s5] sm:$0xff]
  %v152 = vld [vmem:[%s5 + $0x8] sm:$0xff]
  %v153 = vld [vmem:[%s5 + $0x10] sm:$0xff]
  %v154 = vld [vmem:[%s5 + $0x18] sm:$0xff]
  %v155 = vpack.c.bf16 %v150, %v149
  %v156 = vpack.c.bf16 %v152, %v151
  %v157 = vpack.c.bf16 %v154, %v153
  %v158 = vld [vmem:[%s6] sm:$0x1]
  %v160 = vlaneseq
  %v161 = vshrl.u32 %v160, 7
  %v162 = vsub.s32 0, %v161
  %v163 = vrot.slane %v158, %v162
  %v166 = vsel %vm31, %v155, 0
  %168 = vmatprep.subr.bf16.mxu0 0
  %169 = vmatpush1.bf16.msra.mxu0 %v156
  %170 = vmatprep.subr.bf16.mxu0 0
  %171 = vmatpush1.bf16.msra.mxu0 %v157
  %172 = vmatprep.subr.bf16.mxu0 0
  %173 = vmatpush1.bf16.msra.mxu0 0
  %174 = vmatprep.subr.bf16.mxu0 0
  %175 = vmatpush1.bf16.msra.mxu0 0
  %176 = vmatprep.subr.bf16.mxu0 0
  %177 = vmatpush1.bf16.msra.mxu0 0
  %178 = vmatprep.subr.bf16.mxu0 0
  %179 = vmatpush1.bf16.msra.mxu0 0
  %180 = vmatprep.subr.bf16.mxu0 0
  %181 = vmatpush1.bf16.msra.mxu0 0
  %182 = vmatprep.subr.bf16.mxu0 0
  %183 = vmatpush1.bf16.msra.mxu0 0
  %184 = vmatprep.subr.bf16.mxu0 0
  %185 = vmatpush1.bf16.msra.mxu0 0
  %186 = vmatprep.subr.bf16.mxu0 0
  %187 = vmatpush1.bf16.msra.mxu0 0
  %188 = vmatprep.subr.bf16.mxu0 0
  %189 = vmatpush1.bf16.msra.mxu0 0
  %190 = vmatprep.subr.bf16.mxu0 0
  %191 = vmatpush1.bf16.msra.mxu0 0
  %192 = vmatprep.subr.bf16.mxu0 0
  %193 = vmatpush1.bf16.msra.mxu0 0
  %194 = vmatprep.subr.bf16.mxu0 0
  %195 = vmatpush1.bf16.msra.mxu0 0
  %196 = vmatprep.subr.bf16.mxu0 0
  %197 = vmatpush1.bf16.msra.mxu0 0
  %198 = vmatprep.subr.bf16.mxu0 0
  %199 = vmatpush1.bf16.msra.mxu0 0
  %200 = vmatprep.mubr.bf16.mxu0 0
  %201 = vmatmul.mubr.bf16.gmra.mrb[0].mxu0 %v166
  %v202 = vpop.f32.mrb[0].mxu0
  %v203 = vadd.f32 %v163, %v202
  %v204 = vpop.f32.mrb[0].mxu0
  %v205 = vpop.f32.mrb[0].mxu0
  %v206 = vadd.f32 %v163, %v205
  %v207 = vpop.f32.mrb[0].mxu0
  %208 = vdwg.mxu0
  %v209 = vadd.f32 %v27, %v203
  %v210 = vadd.f32 %v28, %v206
  %211 = vst.msk [vmem:[%s7] sm:$0xff] %vm31, %v209
  %212 = vst.msk [vmem:[%s7 + $0x8] sm:$0xff] %vm31, %v210
  // Predicated region
  $region30: #{moe_transformer_decoder_forward.6} parent=0 // pred_check
    _
  $region31: #{moe_transformer_decoder_forward.6} parent=0 // pred_check_branch
    %214 = sbr.rel (0) target = $region33
  $region32: #{moe_transformer_decoder_forward.6} parent=0 // pred_region
    _
  $region33: #{moe_transformer_decoder_forward.6} parent=0 // pred_fallthru
    _
  // Predicated region
  $region34: #{moe_transformer_decoder_forward.6} parent=0 // pred_check
    _
  $region35: #{moe_transformer_decoder_forward.6} parent=0 // pred_check_branch
    %216 = sbr.rel (0) target = $region37
  $region36: #{moe_transformer_decoder_forward.6} parent=0 // pred_region
    _
  $region37: #{moe_transformer_decoder_forward.6} parent=0 // pred_fallthru
    _

// kernel: moe_transformer_decoder_forward.8
$region0: #{moe_transformer_decoder_forward.8}
  #allocation0 [shape = 'u32[]', space=smem, size = 0x4, offset = 0x4, fixed_abs, tag = 'smem constant byte address 0x4 - core index']
  #allocation1 [shape = 'u32[144,128]{1,0:T(1,128)}', space=vmem, size = 0x12000, scoped, tag = 'internal scratch']
  %s0 = inlined_call_operand.vmem [shape: f32[16,32], index: 0, kind: input, shape index: {}]
  %s1 = inlined_call_operand.vmem [shape: f32[1,32], index: 1, kind: input, shape index: {}]
  %s2 = inlined_call_operand.vmem [shape: f32[1,32], index: 2, kind: input, shape index: {}]
  %s3 = inlined_call_operand.vmem [shape: f32[32,4], index: 3, kind: input, shape index: {}]
  %s4 = inlined_call_operand.vmem [shape: f32[32,32], index: 4, kind: input, shape index: {}]
  %s5 = inlined_call_operand.vmem [shape: f32[1,32], index: 5, kind: input, shape index: {}]
  %s6 = inlined_call_operand.vmem [shape: f32[32,32], index: 6, kind: input, shape index: {}]
  %s7 = inlined_call_operand.vmem [shape: f32[1,32], index: 7, kind: input, shape index: {}]
  %s8 = inlined_call_operand.vmem [shape: bf16[16,32], index: 8, kind: output, shape index: {0}]
  %s9 = inlined_call_operand.vmem [shape: f32[16,4], index: 9, kind: output, shape index: {1}]
  %s10 = inlined_call_operand.vmem [shape: f32[16,32], index: 10, kind: output, shape index: {2}]
  %11 = xla_tuple %s8, %s9, %s10
  %s12 = sld [smem:[#allocation0]]
  $region58: #{moe_transformer_decoder_forward.8} parent=0
    _
  %s14 = ssub.s32 1, %s12
  %s15 = scalar_select 0, %s14, %s12
  // Predicated region
  $region2: #{moe_transformer_decoder_forward.8} parent=0 // pred_check
    _
  $region3: #{moe_transformer_decoder_forward.8} parent=0 // pred_check_branch
    %17 = sbr.rel (0) target = $region5
  $region4: #{moe_transformer_decoder_forward.8} parent=0 // pred_region
    _
  $region5: #{moe_transformer_decoder_forward.8} parent=0 // pred_fallthru
    _
  // Predicated region
  $region6: #{moe_transformer_decoder_forward.8} parent=0 // pred_check
    _
  $region7: #{moe_transformer_decoder_forward.8} parent=0 // pred_check_branch
    %19 = sbr.rel (0) target = $region9
  $region8: #{moe_transformer_decoder_forward.8} parent=0 // pred_region
    _
  $region9: #{moe_transformer_decoder_forward.8} parent=0 // pred_fallthru
    _
  // Predicated region
  $region10: #{moe_transformer_decoder_forward.8} parent=0 // pred_check
    _
  $region11: #{moe_transformer_decoder_forward.8} parent=0 // pred_check_branch
    %21 = sbr.rel (0) target = $region13
  $region12: #{moe_transformer_decoder_forward.8} parent=0 // pred_region
    _
  $region13: #{moe_transformer_decoder_forward.8} parent=0 // pred_fallthru
    _
  // Predicated region
  $region14: #{moe_transformer_decoder_forward.8} parent=0 // pred_check
    _
  $region15: #{moe_transformer_decoder_forward.8} parent=0 // pred_check_branch
    %23 = sbr.rel (0) target = $region17
  $region16: #{moe_transformer_decoder_forward.8} parent=0 // pred_region
    _
  $region17: #{moe_transformer_decoder_forward.8} parent=0 // pred_fallthru
    _
  // Predicated region
  $region18: #{moe_transformer_decoder_forward.8} parent=0 // pred_check
    _
  $region19: #{moe_transformer_decoder_forward.8} parent=0 // pred_check_branch
    %25 = sbr.rel (0) target = $region21
  $region20: #{moe_transformer_decoder_forward.8} parent=0 // pred_region
    _
  $region21: #{moe_transformer_decoder_forward.8} parent=0 // pred_fallthru
    _
  // Predicated region
  $region22: #{moe_transformer_decoder_forward.8} parent=0 // pred_check
    _
  $region23: #{moe_transformer_decoder_forward.8} parent=0 // pred_check_branch
    %27 = sbr.rel (0) target = $region25
  $region24: #{moe_transformer_decoder_forward.8} parent=0 // pred_region
    _
  $region25: #{moe_transformer_decoder_forward.8} parent=0 // pred_fallthru
    _
  // Predicated region
  $region26: #{moe_transformer_decoder_forward.8} parent=0 // pred_check
    _
  $region27: #{moe_transformer_decoder_forward.8} parent=0 // pred_check_branch
    %29 = sbr.rel (0) target = $region29
  $region28: #{moe_transformer_decoder_forward.8} parent=0 // pred_region
    _
  $region29: #{moe_transformer_decoder_forward.8} parent=0 // pred_fallthru
    _
  // Predicated region
  $region30: #{moe_transformer_decoder_forward.8} parent=0 // pred_check
    _
  $region31: #{moe_transformer_decoder_forward.8} parent=0 // pred_check_branch
    %31 = sbr.rel (0) target = $region33
  $region32: #{moe_transformer_decoder_forward.8} parent=0 // pred_region
    _
  $region33: #{moe_transformer_decoder_forward.8} parent=0 // pred_fallthru
    _
  %v33 = vld [vmem:[%s0] sm:$0xff]
  %v34 = vld [vmem:[%s0 + $0x8] sm:$0xff]
  %v35 = vld [vmem:[%s1] sm:$0x1]
  %v36 = vld [vmem:[%s2] sm:$0x1]
  %vm37 = vcmask 261120
  %v38 = vsel %vm37, %v33, 0.0
  %39 = vadd.xlane.f32.xlu0 %v38
  %v40 = vpop.xlane.xlu0 %39
  %v41 = vsel %vm37, %v34, 0.0
  %42 = vadd.xlane.f32.xlu0 %v41
  %v43 = vpop.xlane.xlu0 %42
  %v44 = vrcp.pop 32.0
  %v45 = vmul.f32 %v40, %v44
  %v46 = vmul.f32 %v43, %v44
  %v47 = vsub.f32 %v33, %v45
  %v48 = vsub.f32 %v34, %v46
  %v49 = vmul.f32 %v47, %v47
  %v50 = vmul.f32 %v48, %v48
  %v51 = vsel %vm37, %v49, 0.0
  %52 = vadd.xlane.f32.xlu0 %v51
  %v53 = vpop.xlane.xlu0 %52
  %v54 = vsel %vm37, %v50, 0.0
  %55 = vadd.xlane.f32.xlu0 %v54
  %v56 = vpop.xlane.xlu0 %55
  %v57 = vmul.f32 %v53, %v44
  %v58 = vmul.f32 %v56, %v44
  %v59 = vadd.f32 %v57, 1e-05
  %v60 = vadd.f32 %v58, 1e-05
  %v61 = vrsqrt.pop %v59
  %v62 = vrsqrt.pop %v60
  %v63 = vmul.f32 %v47, %v61
  %v64 = vmul.f32 %v48, %v62
  %v66 = vlaneseq
  %v67 = vshrl.u32 %v66, 7
  %v68 = vsub.s32 0, %v67
  %v69 = vrot.slane %v35, %v68
  %v71 = vmul.f32 %v63, %v69
  %v72 = vmul.f32 %v64, %v69
  %v74 = vlaneseq
  %v75 = vshrl.u32 %v74, 7
  %v76 = vsub.s32 0, %v75
  %v77 = vrot.slane %v36, %v76
  %v79 = vadd.f32 %v71, %v77
  %v80 = vadd.f32 %v72, %v77
  %v81 = vpack.c.bf16 %v80, %v79
  %v83 = vunpack.c.l.b16 %v81
  %v84 = vunpack.c.h.b16 %v81
  %v85 = vpack.c.b16 %v83, %v83
  %v86 = vpack.c.b16 %v84, %v84
  %vm89 = vcmask 257024
  %90 = vst.msk [vmem:[%s8] sm:$0xf] %vm89, %v85
  %91 = vst.msk [vmem:[%s8 + $0x4] sm:$0xf] %vm89, %v86
  %v92 = vld [vmem:[%s3] sm:$0xff]
  %v93 = vld [vmem:[%s3 + $0x8] sm:$0xff]
  %v94 = vld [vmem:[%s3 + $0x10] sm:$0xff]
  %v95 = vld [vmem:[%s3 + $0x18] sm:$0xff]
  %v96 = vpack.c.bf16 %v93, %v92
  %v97 = vpack.c.bf16 %v95, %v94
  %v99 = vsel %vm37, %v81, 0
  %101 = vmatprep.subr.bf16.mxu0 0
  %102 = vmatpush1.bf16.msra.mxu0 %v96
  %103 = vmatprep.subr.bf16.mxu0 0
  %104 = vmatpush1.bf16.msra.mxu0 %v97
  %105 = vmatprep.subr.bf16.mxu0 0
  %106 = vmatpush1.bf16.msra.mxu0 0
  %107 = vmatprep.subr.bf16.mxu0 0
  %108 = vmatpush1.bf16.msra.mxu0 0
  %109 = vmatprep.subr.bf16.mxu0 0
  %110 = vmatpush1.bf16.msra.mxu0 0
  %111 = vmatprep.subr.bf16.mxu0 0
  %112 = vmatpush1.bf16.msra.mxu0 0
  %113 = vmatprep.subr.bf16.mxu0 0
  %114 = vmatpush1.bf16.msra.mxu0 0
  %115 = vmatprep.subr.bf16.mxu0 0
  %116 = vmatpush1.bf16.msra.mxu0 0
  %117 = vmatprep.subr.bf16.mxu0 0
  %118 = vmatpush1.bf16.msra.mxu0 0
  %119 = vmatprep.subr.bf16.mxu0 0
  %120 = vmatpush1.bf16.msra.mxu0 0
  %121 = vmatprep.subr.bf16.mxu0 0
  %122 = vmatpush1.bf16.msra.mxu0 0
  %123 = vmatprep.subr.bf16.mxu0 0
  %124 = vmatpush1.bf16.msra.mxu0 0
  %125 = vmatprep.subr.bf16.mxu0 0
  %126 = vmatpush1.bf16.msra.mxu0 0
  %127 = vmatprep.subr.bf16.mxu0 0
  %128 = vmatpush1.bf16.msra.mxu0 0
  %129 = vmatprep.subr.bf16.mxu0 0
  %130 = vmatpush1.bf16.msra.mxu0 0
  %131 = vmatprep.subr.bf16.mxu0 0
  %132 = vmatpush1.bf16.msra.mxu0 0
  %133 = vmatprep.mubr.bf16.mxu0 0
  %134 = vmatmul.mubr.bf16.gmra.mrb[0].mxu0 %v99
  %v135 = vpop.f32.mrb[0].mxu0
  %v136 = vadd.f32 0.0, %v135
  %v137 = vpop.f32.mrb[0].mxu0
  %v138 = vpop.f32.mrb[0].mxu0
  %v139 = vadd.f32 0.0, %v138
  %v140 = vpop.f32.mrb[0].mxu0
  %141 = vdwg.mxu0
  %vm142 = vcmask 31744
  %143 = vst.msk [vmem:[%s9] sm:$0xff] %vm142, %v136
  %144 = vst.msk [vmem:[%s9 + $0x8] sm:$0xff] %vm142, %v139
  %v145 = vld [vmem:[%s4] sm:$0xff]
  %v146 = vld [vmem:[%s4 + $0x8] sm:$0xff]
  %v147 = vld [vmem:[%s4 + $0x10] sm:$0xff]
  %v148 = vld [vmem:[%s4 + $0x18] sm:$0xff]
  %v149 = vpack.c.bf16 %v146, %v145
  %v150 = vpack.c.bf16 %v148, %v147
  %v151 = vld [vmem:[%s5] sm:$0x1]
  %v153 = vlaneseq
  %v154 = vshrl.u32 %v153, 7
  %v155 = vsub.s32 0, %v154
  %v156 = vrot.slane %v151, %v155
  %158 = vmatprep.subr.bf16.mxu0 0
  %159 = vmatpush1.bf16.msra.mxu0 %v149
  %160 = vmatprep.subr.bf16.mxu0 0
  %161 = vmatpush1.bf16.msra.mxu0 %v150
  %162 = vmatprep.subr.bf16.mxu0 0
  %163 = vmatpush1.bf16.msra.mxu0 0
  %164 = vmatprep.subr.bf16.mxu0 0
  %165 = vmatpush1.bf16.msra.mxu0 0
  %166 = vmatprep.subr.bf16.mxu0 0
  %167 = vmatpush1.bf16.msra.mxu0 0
  %168 = vmatprep.subr.bf16.mxu0 0
  %169 = vmatpush1.bf16.msra.mxu0 0
  %170 = vmatprep.subr.bf16.mxu0 0
  %171 = vmatpush1.bf16.msra.mxu0 0
  %172 = vmatprep.subr.bf16.mxu0 0
  %173 = vmatpush1.bf16.msra.mxu0 0
  %174 = vmatprep.subr.bf16.mxu0 0
  %175 = vmatpush1.bf16.msra.mxu0 0
  %176 = vmatprep.subr.bf16.mxu0 0
  %177 = vmatpush1.bf16.msra.mxu0 0
  %178 = vmatprep.subr.bf16.mxu0 0
  %179 = vmatpush1.bf16.msra.mxu0 0
  %180 = vmatprep.subr.bf16.mxu0 0
  %181 = vmatpush1.bf16.msra.mxu0 0
  %182 = vmatprep.subr.bf16.mxu0 0
  %183 = vmatpush1.bf16.msra.mxu0 0
  %184 = vmatprep.subr.bf16.mxu0 0
  %185 = vmatpush1.bf16.msra.mxu0 0
  %186 = vmatprep.subr.bf16.mxu0 0
  %187 = vmatpush1.bf16.msra.mxu0 0
  %188 = vmatprep.subr.bf16.mxu0 0
  %189 = vmatpush1.bf16.msra.mxu0 0
  %190 = vmatprep.mubr.bf16.mxu0 0
  %191 = vmatmul.mubr.bf16.gmra.mrb[0].mxu0 %v99
  %v192 = vpop.f32.mrb[0].mxu0
  %v193 = vadd.f32 %v156, %v192
  %v194 = vpop.f32.mrb[0].mxu0
  %v195 = vpop.f32.mrb[0].mxu0
  %v196 = vadd.f32 %v156, %v195
  %v197 = vpop.f32.mrb[0].mxu0
  %198 = vdwg.mxu0
  %v199 = vxor.u32 %v193, 2147483648
  %v200 = vxor.u32 %v196, 2147483648
  %v201 = vmul.f32 %v199, 1.442695
  %v202 = vpow.pop %v201
  %v203 = vmul.f32 %v200, 1.442695
  %v204 = vpow.pop %v203
  %v205 = vadd.f32 %v202, 1.0
  %v206 = vadd.f32 %v204, 1.0
  %v207 = vrcp.pop %v205
  %v208 = vmul.f32 1.0, %v207
  %v209 = vrcp.pop %v206
  %v210 = vmul.f32 1.0, %v209
  %v211 = vmul.f32 %v193, %v208
  %v212 = vmul.f32 %v196, %v210
  %v213 = vld [vmem:[%s6] sm:$0xff]
  %v214 = vld [vmem:[%s6 + $0x8] sm:$0xff]
  %v215 = vld [vmem:[%s6 + $0x10] sm:$0xff]
  %v216 = vld [vmem:[%s6 + $0x18] sm:$0xff]
  %v217 = vpack.c.bf16 %v212, %v211
  %v218 = vpack.c.bf16 %v214, %v213
  %v219 = vpack.c.bf16 %v216, %v215
  %v220 = vld [vmem:[%s7] sm:$0x1]
  %v222 = vlaneseq
  %v223 = vshrl.u32 %v222, 7
  %v224 = vsub.s32 0, %v223
  %v225 = vrot.slane %v220, %v224
  %v228 = vsel %vm37, %v217, 0
  %230 = vmatprep.subr.bf16.mxu0 0
  %231 = vmatpush1.bf16.msra.mxu0 %v218
  %232 = vmatprep.subr.bf16.mxu0 0
  %233 = vmatpush1.bf16.msra.mxu0 %v219
  %234 = vmatprep.subr.bf16.mxu0 0
  %235 = vmatpush1.bf16.msra.mxu0 0
  %236 = vmatprep.subr.bf16.mxu0 0
  %237 = vmatpush1.bf16.msra.mxu0 0
  %238 = vmatprep.subr.bf16.mxu0 0
  %239 = vmatpush1.bf16.msra.mxu0 0
  %240 = vmatprep.subr.bf16.mxu0 0
  %241 = vmatpush1.bf16.msra.mxu0 0
  %242 = vmatprep.subr.bf16.mxu0 0
  %243 = vmatpush1.bf16.msra.mxu0 0
  %244 = vmatprep.subr.bf16.mxu0 0
  %245 = vmatpush1.bf16.msra.mxu0 0
  %246 = vmatprep.subr.bf16.mxu0 0
  %247 = vmatpush1.bf16.msra.mxu0 0
  %248 = vmatprep.subr.bf16.mxu0 0
  %249 = vmatpush1.bf16.msra.mxu0 0
  %250 = vmatprep.subr.bf16.mxu0 0
  %251 = vmatpush1.bf16.msra.mxu0 0
  %252 = vmatprep.subr.bf16.mxu0 0
  %253 = vmatpush1.bf16.msra.mxu0 0
  %254 = vmatprep.subr.bf16.mxu0 0
  %255 = vmatpush1.bf16.msra.mxu0 0
  %256 = vmatprep.subr.bf16.mxu0 0
  %257 = vmatpush1.bf16.msra.mxu0 0
  %258 = vmatprep.subr.bf16.mxu0 0
  %259 = vmatpush1.bf16.msra.mxu0 0
  %260 = vmatprep.subr.bf16.mxu0 0
  %261 = vmatpush1.bf16.msra.mxu0 0
  %262 = vmatprep.mubr.bf16.mxu0 0
  %263 = vmatmul.mubr.bf16.gmra.mrb[0].mxu0 %v228
  %v264 = vpop.f32.mrb[0].mxu0
  %v265 = vadd.f32 %v225, %v264
  %v266 = vpop.f32.mrb[0].mxu0
  %v267 = vpop.f32.mrb[0].mxu0
  %v268 = vadd.f32 %v225, %v267
  %v269 = vpop.f32.mrb[0].mxu0
  %270 = vdwg.mxu0
  %v271 = vadd.f32 %v33, %v265
  %v272 = vadd.f32 %v34, %v268
  %273 = vst.msk [vmem:[%s10] sm:$0xff] %vm37, %v271
  %274 = vst.msk [vmem:[%s10 + $0x8] sm:$0xff] %vm37, %v272
  // Predicated region
  $region34: #{moe_transformer_decoder_forward.8} parent=0 // pred_check
    _
  $region35: #{moe_transformer_decoder_forward.8} parent=0 // pred_check_branch
    %276 = sbr.rel (0) target = $region37
  $region36: #{moe_transformer_decoder_forward.8} parent=0 // pred_region
    _
  $region37: #{moe_transformer_decoder_forward.8} parent=0 // pred_fallthru
    _
  // Predicated region
  $region38: #{moe_transformer_decoder_forward.8} parent=0 // pred_check
    _
  $region39: #{moe_transformer_decoder_forward.8} parent=0 // pred_check_branch
    %278 = sbr.rel (0) target = $region41
  $region40: #{moe_transformer_decoder_forward.8} parent=0 // pred_region
    _
  $region41: #{moe_transformer_decoder_forward.8} parent=0 // pred_fallthru
    _
  // Predicated region
  $region42: #{moe_transformer_decoder_forward.8} parent=0 // pred_check
    _
  $region43: #{moe_transformer_decoder_forward.8} parent=0 // pred_check_branch
    %280 = sbr.rel (0) target = $region45
  $region44: #{moe_transformer_decoder_forward.8} parent=0 // pred_region
    _
  $region45: #{moe_transformer_decoder_forward.8} parent=0 // pred_fallthru
    _
  // Predicated region
  $region46: #{moe_transformer_decoder_forward.8} parent=0 // pred_check
    _
  $region47: #{moe_transformer_decoder_forward.8} parent=0 // pred_check_branch
    %282 = sbr.rel (0) target = $region49
  $region48: #{moe_transformer_decoder_forward.8} parent=0 // pred_region
    _
  $region49: #{moe_transformer_decoder_forward.8} parent=0 // pred_fallthru
    _
  // Predicated region
  $region50: #{moe_transformer_decoder_forward.8} parent=0 // pred_check
    _
  $region51: #{moe_transformer_decoder_forward.8} parent=0 // pred_check_branch
    %284 = sbr.rel (0) target = $region53
  $region52: #{moe_transformer_decoder_forward.8} parent=0 // pred_region
    _
  $region53: #{moe_transformer_decoder_forward.8} parent=0 // pred_fallthru
    _
  // Predicated region
  $region54: #{moe_transformer_decoder_forward.8} parent=0 // pred_check
    _
  $region55: #{moe_transformer_decoder_forward.8} parent=0 // pred_check_branch
    %286 = sbr.rel (0) target = $region57
  $region56: #{moe_transformer_decoder_forward.8} parent=0 // pred_region
    _
  $region57: #{moe_transformer_decoder_forward.8} parent=0 // pred_fallthru
    _

// kernel: moe_transformer_decoder_forward.5
$region0: #{moe_transformer_decoder_forward.5}
  #allocation0 [shape = 'u32[]', space=smem, size = 0x4, offset = 0x4, fixed_abs, tag = 'smem constant byte address 0x4 - core index']
  #allocation1 [shape = 'u32[144,128]{1,0:T(1,128)}', space=vmem, size = 0x12000, scoped, tag = 'internal scratch']
  %s0 = inlined_call_operand.vmem [shape: f32[2,8,32], index: 0, kind: input, shape index: {}]
  %s1 = inlined_call_operand.vmem [shape: f32[1,32], index: 1, kind: input, shape index: {}]
  %s2 = inlined_call_operand.vmem [shape: f32[1,32], index: 2, kind: input, shape index: {}]
  %s3 = inlined_call_operand.vmem [shape: f32[32,96], index: 3, kind: input, shape index: {}]
  %s4 = inlined_call_operand.vmem [shape: f32[32,32], index: 4, kind: input, shape index: {}]
  %s5 = inlined_call_operand.vmem [shape: f32[1,32], index: 5, kind: input, shape index: {}]
  %s6 = inlined_call_operand.vmem [shape: f32[2,8,32], index: 6, kind: output, shape index: {}]
  %s7 = sld [smem:[#allocation0]]
  $region57: #{moe_transformer_decoder_forward.5} parent=0
    _
  %s9 = ssub.s32 1, %s7
  %s10 = scalar_select 0, %s9, %s7
  loop: start=0, step=1, limit=4
  $region2: #{moe_transformer_decoder_forward.5} parent=0 // loop_pre_header
    _
  $region3: #{moe_transformer_decoder_forward.5} parent=0 // loop_header
    %s12 = sphi 0, %s16
    %p13 = scmp.ge.s32.totalorder %s12, 4
    %s22 = sphi 0, %s24
    %s25 = sphi 0, %s22
    %s26 = sphi 0, %s25
    %s42 = sphi 0, %s26
    %s46 = sphi 0, %s46
    %s48 = sphi 0, %s46
    %s49 = sphi 0, %s48
    %s63 = sphi 0, %s49
    %s67 = sphi 0, %s67
    %s69 = sphi 0, %s67
    %s70 = sphi 0, %s69
    %s84 = sphi 0, %s70
    %s88 = sphi 0, %s88
    %s90 = sphi 0, %s88
    %s91 = sphi 0, %s90
    %s105 = sphi 0, %s91
    %s109 = sphi 0, %s109
    %s111 = sphi 0, %s109
    %s112 = sphi 0, %s111
    %s126 = sphi 0, %s112
    %s130 = sphi 0, %s130
    %s132 = sphi 0, %s130
    %s133 = sphi 0, %s132
    %s147 = sphi 0, %s133
    %s153 = sphi 0, %s155
    %s156 = sphi 0, %s153
    %s157 = sphi 0, %s156
    %s173 = sphi 0, %s157
  $region4: #{moe_transformer_decoder_forward.5} parent=0 // loop_header_branch
    %15 = sbr.rel (%p13) target = $region8
  $region5: #{moe_transformer_decoder_forward.5} parent=0 // loop_body
    %s17 = ssub.s32 %s12, 1
    %s18 = ssub.s32 %s12, 2
    %s19 = sadd.s32 %s12, 1
    %s20 = ssub.s32 %s12, %s19
    %p21 = scmp.eq.s32.totalorder %s20, 0
    %s23 = sadd.s32 %s22, 1
    %s24 = scalar_select %p21, %s22, %s23
    %p27 = pneg %p21
    %p28 = scmp.eq.s32.totalorder %s12, 1
    %p29 = por %p27, %p28
    %p30 = scmp.ne.s32.totalorder %s22, %s25
    %p31 = scmp.eq.s32.totalorder %s12, 0
    %p32 = por %p30, %p31
    %p33 = scmp.ne.s32.totalorder %s22, %s25
    %p34 = scmp.eq.s32.totalorder %s17, 1
    %p35 = por %p33, %p34
    %p36 = scmp.ne.s32.totalorder %s25, %s26
    %p37 = scmp.eq.s32.totalorder %s17, 0
    %p38 = por %p36, %p37
    %p39 = scmp.ne.s32.totalorder %s25, %s26
    %p40 = scmp.eq.s32.totalorder %s18, 1
    %p41 = por %p39, %p40
    %p43 = scmp.ne.s32.totalorder %s26, %s42
    %p44 = scmp.eq.s32.totalorder %s18, 0
    %p45 = por %p43, %p44
    %s47 = sadd.s32 %s46, 1
    %p50 = scmp.eq.s32.totalorder %s12, 1
    %p51 = scmp.ne.s32.totalorder %s46, %s48
    %p52 = scmp.eq.s32.totalorder %s12, 0
    %p53 = por %p51, %p52
    %p54 = scmp.ne.s32.totalorder %s46, %s48
    %p55 = scmp.eq.s32.totalorder %s17, 1
    %p56 = por %p54, %p55
    %p57 = scmp.ne.s32.totalorder %s48, %s49
    %p58 = scmp.eq.s32.totalorder %s17, 0
    %p59 = por %p57, %p58
    %p60 = scmp.ne.s32.totalorder %s48, %s49
    %p61 = scmp.eq.s32.totalorder %s18, 1
    %p62 = por %p60, %p61
    %p64 = scmp.ne.s32.totalorder %s49, %s63
    %p65 = scmp.eq.s32.totalorder %s18, 0
    %p66 = por %p64, %p65
    %s68 = sadd.s32 %s67, 1
    %p71 = scmp.eq.s32.totalorder %s12, 1
    %p72 = scmp.ne.s32.totalorder %s67, %s69
    %p73 = scmp.eq.s32.totalorder %s12, 0
    %p74 = por %p72, %p73
    %p75 = scmp.ne.s32.totalorder %s67, %s69
    %p76 = scmp.eq.s32.totalorder %s17, 1
    %p77 = por %p75, %p76
    %p78 = scmp.ne.s32.totalorder %s69, %s70
    %p79 = scmp.eq.s32.totalorder %s17, 0
    %p80 = por %p78, %p79
    %p81 = scmp.ne.s32.totalorder %s69, %s70
    %p82 = scmp.eq.s32.totalorder %s18, 1
    %p83 = por %p81, %p82
    %p85 = scmp.ne.s32.totalorder %s70, %s84
    %p86 = scmp.eq.s32.totalorder %s18, 0
    %p87 = por %p85, %p86
    %s89 = sadd.s32 %s88, 1
    %p92 = scmp.eq.s32.totalorder %s12, 1
    %p93 = scmp.ne.s32.totalorder %s88, %s90
    %p94 = scmp.eq.s32.totalorder %s12, 0
    %p95 = por %p93, %p94
    %p96 = scmp.ne.s32.totalorder %s88, %s90
    %p97 = scmp.eq.s32.totalorder %s17, 1
    %p98 = por %p96, %p97
    %p99 = scmp.ne.s32.totalorder %s90, %s91
    %p100 = scmp.eq.s32.totalorder %s17, 0
    %p101 = por %p99, %p100
    %p102 = scmp.ne.s32.totalorder %s90, %s91
    %p103 = scmp.eq.s32.totalorder %s18, 1
    %p104 = por %p102, %p103
    %p106 = scmp.ne.s32.totalorder %s91, %s105
    %p107 = scmp.eq.s32.totalorder %s18, 0
    %p108 = por %p106, %p107
    %s110 = sadd.s32 %s109, 1
    %p113 = scmp.eq.s32.totalorder %s12, 1
    %p114 = scmp.ne.s32.totalorder %s109, %s111
    %p115 = scmp.eq.s32.totalorder %s12, 0
    %p116 = por %p114, %p115
    %p117 = scmp.ne.s32.totalorder %s109, %s111
    %p118 = scmp.eq.s32.totalorder %s17, 1
    %p119 = por %p117, %p118
    %p120 = scmp.ne.s32.totalorder %s111, %s112
    %p121 = scmp.eq.s32.totalorder %s17, 0
    %p122 = por %p120, %p121
    %p123 = scmp.ne.s32.totalorder %s111, %s112
    %p124 = scmp.eq.s32.totalorder %s18, 1
    %p125 = por %p123, %p124
    %p127 = scmp.ne.s32.totalorder %s112, %s126
    %p128 = scmp.eq.s32.totalorder %s18, 0
    %p129 = por %p127, %p128
    %s131 = sadd.s32 %s130, 1
    %p134 = scmp.eq.s32.totalorder %s12, 1
    %p135 = scmp.ne.s32.totalorder %s130, %s132
    %p136 = scmp.eq.s32.totalorder %s12, 0
    %p137 = por %p135, %p136
    %p138 = scmp.ne.s32.totalorder %s130, %s132
    %p139 = scmp.eq.s32.totalorder %s17, 1
    %p140 = por %p138, %p139
    %p141 = scmp.ne.s32.totalorder %s132, %s133
    %p142 = scmp.eq.s32.totalorder %s17, 0
    %p143 = por %p141, %p142
    %p144 = scmp.ne.s32.totalorder %s132, %s133
    %p145 = scmp.eq.s32.totalorder %s18, 1
    %p146 = por %p144, %p145
    %p148 = scmp.ne.s32.totalorder %s133, %s147
    %p149 = scmp.eq.s32.totalorder %s18, 0
    %p150 = por %p148, %p149
    %s151 = ssub.s32 %s12, %s19
    %p152 = scmp.eq.s32.totalorder %s151, 0
    %s154 = sadd.s32 %s153, 1
    %s155 = scalar_select %p152, %s153, %s154
    %p158 = pneg %p152
    %p159 = scmp.eq.s32.totalorder %s12, 1
    %p160 = por %p158, %p159
    %p161 = scmp.ne.s32.totalorder %s153, %s156
    %p162 = scmp.eq.s32.totalorder %s12, 0
    %p163 = por %p161, %p162
    %p164 = scmp.ne.s32.totalorder %s153, %s156
    %p165 = scmp.eq.s32.totalorder %s17, 1
    %p166 = por %p164, %p165
    %p167 = scmp.ne.s32.totalorder %s156, %s157
    %p168 = scmp.eq.s32.totalorder %s17, 0
    %p169 = por %p167, %p168
    %p170 = scmp.ne.s32.totalorder %s156, %s157
    %p171 = scmp.eq.s32.totalorder %s18, 1
    %p172 = por %p170, %p171
    %p174 = scmp.ne.s32.totalorder %s157, %s173
    %p175 = scmp.eq.s32.totalorder %s18, 0
    %p176 = por %p174, %p175
    %p177 = scmp.le.s32.totalorder 1, %s12
    %p178 = scmp.lt.s32.totalorder %s12, 3
    %p179 = pnand %p177, %p178
    %p180 = pneg %p179
    // Predicated region
    $region9: #{moe_transformer_decoder_forward.5} parent=5 // pred_check
      _
    $region10: #{moe_transformer_decoder_forward.5} parent=5 // pred_check_branch
      %182 = sbr.rel (%p179) target = $region12
    $region11: #{moe_transformer_decoder_forward.5} parent=5 // pred_region
      %s183 = ssub.s32 %s12, 1
      // Predicated region
      $region13: #{moe_transformer_decoder_forward.5} parent=11 // pred_check
        %p184 = pneg %p59
      $region14: #{moe_transformer_decoder_forward.5} parent=11 // pred_check_branch
        %186 = sbr.rel (%p184) target = $region16
      $region15: #{moe_transformer_decoder_forward.5} parent=11 // pred_region
        _
      $region16: #{moe_transformer_decoder_forward.5} parent=11 // pred_fallthru
        _
      // Predicated region
      $region17: #{moe_transformer_decoder_forward.5} parent=11 // pred_check
        %p187 = pneg %p80
      $region18: #{moe_transformer_decoder_forward.5} parent=11 // pred_check_branch
        %189 = sbr.rel (%p187) target = $region20
      $region19: #{moe_transformer_decoder_forward.5} parent=11 // pred_region
        _
      $region20: #{moe_transformer_decoder_forward.5} parent=11 // pred_fallthru
        _
      // Predicated region
      $region21: #{moe_transformer_decoder_forward.5} parent=11 // pred_check
        %p190 = pneg %p101
      $region22: #{moe_transformer_decoder_forward.5} parent=11 // pred_check_branch
        %192 = sbr.rel (%p190) target = $region24
      $region23: #{moe_transformer_decoder_forward.5} parent=11 // pred_region
        _
      $region24: #{moe_transformer_decoder_forward.5} parent=11 // pred_fallthru
        _
      // Predicated region
      $region25: #{moe_transformer_decoder_forward.5} parent=11 // pred_check
        %p193 = pneg %p122
      $region26: #{moe_transformer_decoder_forward.5} parent=11 // pred_check_branch
        %195 = sbr.rel (%p193) target = $region28
      $region27: #{moe_transformer_decoder_forward.5} parent=11 // pred_region
        _
      $region28: #{moe_transformer_decoder_forward.5} parent=11 // pred_fallthru
        _
      // Predicated region
      $region29: #{moe_transformer_decoder_forward.5} parent=11 // pred_check
        %p196 = pneg %p143
      $region30: #{moe_transformer_decoder_forward.5} parent=11 // pred_check_branch
        %198 = sbr.rel (%p196) target = $region32
      $region31: #{moe_transformer_decoder_forward.5} parent=11 // pred_region
        _
      $region32: #{moe_transformer_decoder_forward.5} parent=11 // pred_fallthru
        _
    $region12: #{moe_transformer_decoder_forward.5} parent=5 // pred_fallthru
      _
    %p199 = scmp.lt.s32.totalorder %s12, 2
    // Predicated region
    $region33: #{moe_transformer_decoder_forward.5} parent=5 // pred_check
      %p200 = pneg %p199
    $region34: #{moe_transformer_decoder_forward.5} parent=5 // pred_check_branch
      %202 = sbr.rel (%p200) target = $region36
    $region35: #{moe_transformer_decoder_forward.5} parent=5 // pred_region
      // Predicated region
      $region37: #{moe_transformer_decoder_forward.5} parent=35 // pred_check
        %p203 = pneg %p32
      $region38: #{moe_transformer_decoder_forward.5} parent=35 // pred_check_branch
        %205 = sbr.rel (%p203) target = $region40
      $region39: #{moe_transformer_decoder_forward.5} parent=35 // pred_region
        %p206 = scmp.lt.s32.totalorder %s12, 1
        %s207 = scalar_select %p206, %s12, 1
        %s208 = smul.addr %s207, 8
        %s209 = scalar_lea.vmem %s0, %s208
      $region40: #{moe_transformer_decoder_forward.5} parent=35 // pred_fallthru
        _
    $region36: #{moe_transformer_decoder_forward.5} parent=5 // pred_fallthru
      _
    %p210 = scmp.le.s32.totalorder 1, %s12
    %p211 = scmp.lt.s32.totalorder %s12, 3
    %p212 = pnand %p210, %p211
    %p213 = pneg %p212
    // Predicated region
    $region41: #{moe_transformer_decoder_forward.5} parent=5 // pred_check
      _
    $region42: #{moe_transformer_decoder_forward.5} parent=5 // pred_check_branch
      %215 = sbr.rel (%p212) target = $region44
    $region43: #{moe_transformer_decoder_forward.5} parent=5 // pred_region
      %s216 = ssub.s32 %s12, 1
      %p217 = scmp.lt.s32.totalorder %s17, 1
      %s218 = scalar_select %p217, %s17, 1
      %s219 = smul.addr %s218, 8
      %s220 = scalar_lea.vmem %s0, %s219
      %p221 = pneg %p38
      %p222 = pneg %p35
      %p223 = pneg %p59
      %p224 = pneg %p56
      %p225 = pneg %p80
      %p226 = pneg %p77
      %p227 = pneg %p101
      %p228 = pneg %p98
      %p229 = pneg %p122
      %p230 = pneg %p119
      %p231 = pneg %p143
      %p232 = pneg %p140
      %p233 = pneg %p169
      %p234 = pneg %p166
      %p235 = scmp.lt.s32.totalorder %s17, 1
      %s236 = scalar_select %p235, %s17, 1
      %s237 = smul.addr %s236, 8
      %s238 = scalar_lea.vmem %s6, %s237
      %p239 = scmp.lt.s32.totalorder %s17, 1
      %s240 = scalar_select %p239, %s17, 1
      %s241 = smul.addr %s240, 8
      %s242 = scalar_lea.vmem %s0, %s241
      %p243 = scmp.lt.s32.totalorder %s17, 1
      %s244 = scalar_select %p243, %s17, 1
      %s245 = smul.addr %s244, 8
      %s246 = scalar_lea.vmem %s6, %s245
      %v248 = vld [vmem:[%s242] sm:$0xff]
      %v249 = vld [vmem:[%s1] sm:$0x1]
      %v250 = vld [vmem:[%s2] sm:$0x1]
      %vm251 = vcmask 261120
      %v252 = vsel %vm251, %v248, 0.0
      %253 = vadd.xlane.f32.xlu0 %v252
      %v254 = vpop.xlane.xlu0 %253
      %v255 = vrcp.pop 32.0
      %v256 = vmul.f32 %v254, %v255
      %v257 = vsub.f32 %v248, %v256
      %v258 = vmul.f32 %v257, %v257
      %v259 = vsel %vm251, %v258, 0.0
      %260 = vadd.xlane.f32.xlu0 %v259
      %v261 = vpop.xlane.xlu0 %260
      %v262 = vmul.f32 %v261, %v255
      %v263 = vadd.f32 %v262, 1e-05
      %v264 = vrsqrt.pop %v263
      %v265 = vmul.f32 %v257, %v264
      %v267 = vlaneseq
      %v268 = vshrl.u32 %v267, 7
      %v269 = vsub.s32 0, %v268
      %v270 = vrot.slane %v249, %v269
      %v272 = vmul.f32 %v265, %v270
      %v274 = vlaneseq
      %v275 = vshrl.u32 %v274, 7
      %v276 = vsub.s32 0, %v275
      %v277 = vrot.slane %v250, %v276
      %v279 = vadd.f32 %v272, %v277
      %v280 = vld [vmem:[%s3] sm:$0xff]
      %v281 = vld [vmem:[%s3 + $0x8] sm:$0xff]
      %v282 = vld [vmem:[%s3 + $0x10] sm:$0xff]
      %v283 = vld [vmem:[%s3 + $0x18] sm:$0xff]
      %v284 = vpack.c.bf16 %v279, %v279
      %v285 = vpack.c.bf16 %v281, %v280
      %v286 = vpack.c.bf16 %v283, %v282
      %v288 = vsel %vm251, %v284, 0
      %290 = vmatprep.subr.bf16.mxu0 0
      %291 = vmatpush1.bf16.msra.mxu0 %v285
      %292 = vmatprep.subr.bf16.mxu0 0
      %293 = vmatpush1.bf16.msra.mxu0 %v286
      %294 = vmatprep.subr.bf16.mxu0 0
      %295 = vmatpush1.bf16.msra.mxu0 0
      %296 = vmatprep.subr.bf16.mxu0 0
      %297 = vmatpush1.bf16.msra.mxu0 0
      %298 = vmatprep.subr.bf16.mxu0 0
      %299 = vmatpush1.bf16.msra.mxu0 0
      %300 = vmatprep.subr.bf16.mxu0 0
      %301 = vmatpush1.bf16.msra.mxu0 0
      %302 = vmatprep.subr.bf16.mxu0 0
      %303 = vmatpush1.bf16.msra.mxu0 0
      %304 = vmatprep.subr.bf16.mxu0 0
      %305 = vmatpush1.bf16.msra.mxu0 0
      %306 = vmatprep.subr.bf16.mxu0 0
      %307 = vmatpush1.bf16.msra.mxu0 0
      %308 = vmatprep.subr.bf16.mxu0 0
      %309 = vmatpush1.bf16.msra.mxu0 0
      %310 = vmatprep.subr.bf16.mxu0 0
      %311 = vmatpush1.bf16.msra.mxu0 0
      %312 = vmatprep.subr.bf16.mxu0 0
      %313 = vmatpush1.bf16.msra.mxu0 0
      %314 = vmatprep.subr.bf16.mxu0 0
      %315 = vmatpush1.bf16.msra.mxu0 0
      %316 = vmatprep.subr.bf16.mxu0 0
      %317 = vmatpush1.bf16.msra.mxu0 0
      %318 = vmatprep.subr.bf16.mxu0 0
      %319 = vmatpush1.bf16.msra.mxu0 0
      %320 = vmatprep.subr.bf16.mxu0 0
      %321 = vmatpush1.bf16.msra.mxu0 0
      %322 = vmatprep.mubr.bf16.mxu0 0
      %323 = vmatmul.mubr.bf16.gmra.mrb[0].mxu0 %v288
      %v324 = vpop.f32.mrb[0].mxu0
      %v325 = vadd.f32 0.0, %v324
      %v326 = vpop.f32.mrb[0].mxu0
      %v327 = vpop.f32.mrb[0].mxu0
      %v328 = vpop.f32.mrb[0].mxu0
      %329 = vdwg.mxu0
      %v330 = vmul.f32 %v325, 0.25
      %v331 = vpack.c.bf16 %v330, %v330
      %v332 = vpack.c.bf16 %v325, %v325
      %334 = vrot.lane.b32.xlu0 %v332, 96
      %v335 = vpop.permute.xlu0 %334
      %vm336 = vcmask 130048
      %v338 = vsel %vm336, %v331, 0
      %v341 = vsel %vm336, %v335, 0
      %343 = vmatprep.subr.bf16.mxu0 0
      %344 = vmatpush1.bf16.xpose.msra.mxu0 %v341
      %345 = vmatprep.subr.bf16.mxu0 0
      %346 = vmatpush1.bf16.xpose.msra.mxu0 0
      %347 = vmatprep.subr.bf16.mxu0 0
      %348 = vmatpush1.bf16.xpose.msra.mxu0 0
      %349 = vmatprep.subr.bf16.mxu0 0
      %350 = vmatpush1.bf16.xpose.msra.mxu0 0
      %351 = vmatprep.subr.bf16.mxu0 0
      %352 = vmatpush1.bf16.xpose.msra.mxu0 0
      %353 = vmatprep.subr.bf16.mxu0 0
      %354 = vmatpush1.bf16.xpose.msra.mxu0 0
      %355 = vmatprep.subr.bf16.mxu0 0
      %356 = vmatpush1.bf16.xpose.msra.mxu0 0
      %357 = vmatprep.subr.bf16.mxu0 0
      %358 = vmatpush1.bf16.xpose.msra.mxu0 0
      %359 = vmatprep.subr.bf16.mxu0 0
      %360 = vmatpush1.bf16.xpose.msra.mxu0 0
      %361 = vmatprep.subr.bf16.mxu0 0
      %362 = vmatpush1.bf16.xpose.msra.mxu0 0
      %363 = vmatprep.subr.bf16.mxu0 0
      %364 = vmatpush1.bf16.xpose.msra.mxu0 0
      %365 = vmatprep.subr.bf16.mxu0 0
      %366 = vmatpush1.bf16.xpose.msra.mxu0 0
      %367 = vmatprep.subr.bf16.mxu0 0
      %368 = vmatpush1.bf16.xpose.msra.mxu0 0
      %369 = vmatprep.subr.bf16.mxu0 0
      %370 = vmatpush1.bf16.xpose.msra.mxu0 0
      %371 = vmatprep.subr.bf16.mxu0 0
      %372 = vmatpush1.bf16.xpose.msra.mxu0 0
      %373 = vmatprep.subr.bf16.mxu0 0
      %374 = vmatpush1.bf16.xpose.msra.mxu0 0
      %375 = vmatprep.mubr.bf16.mxu0 0
      %376 = vmatmul.mubr.bf16.gmra.mrb[0].mxu0 %v338
      %v377 = vpop.f32.mrb[0].mxu0
      %v378 = vadd.f32 0.0, %v377
      %v379 = vpop.f32.mrb[0].mxu0
      %v380 = vpop.f32.mrb[0].mxu0
      %v381 = vpop.f32.mrb[0].mxu0
      %382 = vdwg.mxu0
      %vm383 = vcmask 64512
      %v384 = vsel %vm383, %v378, -inf
      %385 = vmax.xlane.f32.xlu0 %v384
      %v386 = vpop.xlane.xlu0 %385
      %v387 = vsub.f32 %v378, %v386
      %v388 = vmul.f32 %v387, 1.442695
      %v389 = vpow.pop %v388
      %v390 = vsel %vm383, %v389, 0.0
      %391 = vadd.xlane.f32.xlu0 %v390
      %v392 = vpop.xlane.xlu0 %391
      %v393 = vrcp.pop %v392
      %v394 = vmul.f32 %v389, %v393
      %v395 = vpack.c.bf16 %v394, %v394
      %396 = vrot.lane.b32.xlu0 %v332, 64
      %v397 = vpop.permute.xlu0 %396
      %v399 = vsel %vm383, %v395, 0
      %vm401 = vcmask 1043456
      %v403 = vsel %vm401, %v397, 0
      %405 = vmatprep.subr.bf16.mxu0 0
      %406 = vmatpush1.bf16.msra.mxu0 %v403
      %407 = vmatprep.subr.bf16.mxu0 0
      %408 = vmatpush1.bf16.msra.mxu0 0
      %409 = vmatprep.subr.bf16.mxu0 0
      %410 = vmatpush1.bf16.msra.mxu0 0
      %411 = vmatprep.subr.bf16.mxu0 0
      %412 = vmatpush1.bf16.msra.mxu0 0
      %413 = vmatprep.subr.bf16.mxu0 0
      %414 = vmatpush1.bf16.msra.mxu0 0
      %415 = vmatprep.subr.bf16.mxu0 0
      %416 = vmatpush1.bf16.msra.mxu0 0
      %417 = vmatprep.subr.bf16.mxu0 0
      %418 = vmatpush1.bf16.msra.mxu0 0
      %419 = vmatprep.subr.bf16.mxu0 0
      %420 = vmatpush1.bf16.msra.mxu0 0
      %421 = vmatprep.subr.bf16.mxu0 0
      %422 = vmatpush1.bf16.msra.mxu0 0
      %423 = vmatprep.subr.bf16.mxu0 0
      %424 = vmatpush1.bf16.msra.mxu0 0
      %425 = vmatprep.subr.bf16.mxu0 0
      %426 = vmatpush1.bf16.msra.mxu0 0
      %427 = vmatprep.subr.bf16.mxu0 0
      %428 = vmatpush1.bf16.msra.mxu0 0
      %429 = vmatprep.subr.bf16.mxu0 0
      %430 = vmatpush1.bf16.msra.mxu0 0
      %431 = vmatprep.subr.bf16.mxu0 0
      %432 = vmatpush1.bf16.msra.mxu0 0
      %433 = vmatprep.subr.bf16.mxu0 0
      %434 = vmatpush1.bf16.msra.mxu0 0
      %435 = vmatprep.subr.bf16.mxu0 0
      %436 = vmatpush1.bf16.msra.mxu0 0
      %437 = vmatprep.mubr.bf16.mxu0 0
      %438 = vmatmul.mubr.bf16.gmra.mrb[0].mxu0 %v399
      %v439 = vpop.f32.mrb[0].mxu0
      %v440 = vadd.f32 0.0, %v439
      %v441 = vpop.f32.mrb[0].mxu0
      %v442 = vpop.f32.mrb[0].mxu0
      %v443 = vpop.f32.mrb[0].mxu0
      %444 = vdwg.mxu0
      %446 = vrot.lane.b32.xlu0 %v331, 112
      %v447 = vpop.permute.xlu0 %446
      %448 = vrot.lane.b32.xlu0 %v332, 80
      %v449 = vpop.permute.xlu0 %448
      %v451 = vsel %vm336, %v447, 0
      %v454 = vsel %vm336, %v449, 0
      %456 = vmatprep.subr.bf16.mxu0 0
      %457 = vmatpush1.bf16.xpose.msra.mxu0 %v454
      %458 = vmatprep.subr.bf16.mxu0 0
      %459 = vmatpush1.bf16.xpose.msra.mxu0 0
      %460 = vmatprep.subr.bf16.mxu0 0
      %461 = vmatpush1.bf16.xpose.msra.mxu0 0
      %462 = vmatprep.subr.bf16.mxu0 0
      %463 = vmatpush1.bf16.xpose.msra.mxu0 0
      %464 = vmatprep.subr.bf16.mxu0 0
      %465 = vmatpush1.bf16.xpose.msra.mxu0 0
      %466 = vmatprep.subr.bf16.mxu0 0
      %467 = vmatpush1.bf16.xpose.msra.mxu0 0
      %468 = vmatprep.subr.bf16.mxu0 0
      %469 = vmatpush1.bf16.xpose.msra.mxu0 0
      %470 = vmatprep.subr.bf16.mxu0 0
      %471 = vmatpush1.bf16.xpose.msra.mxu0 0
      %472 = vmatprep.subr.bf16.mxu0 0
      %473 = vmatpush1.bf16.xpose.msra.mxu0 0
      %474 = vmatprep.subr.bf16.mxu0 0
      %475 = vmatpush1.bf16.xpose.msra.mxu0 0
      %476 = vmatprep.subr.bf16.mxu0 0
      %477 = vmatpush1.bf16.xpose.msra.mxu0 0
      %478 = vmatprep.subr.bf16.mxu0 0
      %479 = vmatpush1.bf16.xpose.msra.mxu0 0
      %480 = vmatprep.subr.bf16.mxu0 0
      %481 = vmatpush1.bf16.xpose.msra.mxu0 0
      %482 = vmatprep.subr.bf16.mxu0 0
      %483 = vmatpush1.bf16.xpose.msra.mxu0 0
      %484 = vmatprep.subr.bf16.mxu0 0
      %485 = vmatpush1.bf16.xpose.msra.mxu0 0
      %486 = vmatprep.subr.bf16.mxu0 0
      %487 = vmatpush1.bf16.xpose.msra.mxu0 0
      %488 = vmatprep.mubr.bf16.mxu0 0
      %489 = vmatmul.mubr.bf16.gmra.mrb[0].mxu0 %v451
      %v490 = vpop.f32.mrb[0].mxu0
      %v491 = vadd.f32 0.0, %v490
      %v492 = vpop.f32.mrb[0].mxu0
      %v493 = vpop.f32.mrb[0].mxu0
      %v494 = vpop.f32.mrb[0].mxu0
      %495 = vdwg.mxu0
      %v496 = vsel %vm383, %v491, -inf
      %497 = vmax.xlane.f32.xlu0 %v496
      %v498 = vpop.xlane.xlu0 %497
      %v499 = vsub.f32 %v491, %v498
      %v500 = vmul.f32 %v499, 1.442695
      %v501 = vpow.pop %v500
      %v502 = vsel %vm383, %v501, 0.0
      %503 = vadd.xlane.f32.xlu0 %v502
      %v504 = vpop.xlane.xlu0 %503
      %v505 = vrcp.pop %v504
      %v506 = vmul.f32 %v501, %v505
      %v507 = vpack.c.bf16 %v506, %v506
      %508 = vrot.lane.b32.xlu0 %v332, 48
      %v509 = vpop.permute.xlu0 %508
      %v511 = vsel %vm383, %v507, 0
      %v514 = vsel %vm401, %v509, 0
      %516 = vmatprep.subr.bf16.mxu0 0
      %517 = vmatpush1.bf16.msra.mxu0 %v514
      %518 = vmatprep.subr.bf16.mxu0 0
      %519 = vmatpush1.bf16.msra.mxu0 0
      %520 = vmatprep.subr.bf16.mxu0 0
      %521 = vmatpush1.bf16.msra.mxu0 0
      %522 = vmatprep.subr.bf16.mxu0 0
      %523 = vmatpush1.bf16.msra.mxu0 0
      %524 = vmatprep.subr.bf16.mxu0 0
      %525 = vmatpush1.bf16.msra.mxu0 0
      %526 = vmatprep.subr.bf16.mxu0 0
      %527 = vmatpush1.bf16.msra.mxu0 0
      %528 = vmatprep.subr.bf16.mxu0 0
      %529 = vmatpush1.bf16.msra.mxu0 0
      %530 = vmatprep.subr.bf16.mxu0 0
      %531 = vmatpush1.bf16.msra.mxu0 0
      %532 = vmatprep.subr.bf16.mxu0 0
      %533 = vmatpush1.bf16.msra.mxu0 0
      %534 = vmatprep.subr.bf16.mxu0 0
      %535 = vmatpush1.bf16.msra.mxu0 0
      %536 = vmatprep.subr.bf16.mxu0 0
      %537 = vmatpush1.bf16.msra.mxu0 0
      %538 = vmatprep.subr.bf16.mxu0 0
      %539 = vmatpush1.bf16.msra.mxu0 0
      %540 = vmatprep.subr.bf16.mxu0 0
      %541 = vmatpush1.bf16.msra.mxu0 0
      %542 = vmatprep.subr.bf16.mxu0 0
      %543 = vmatpush1.bf16.msra.mxu0 0
      %544 = vmatprep.subr.bf16.mxu0 0
      %545 = vmatpush1.bf16.msra.mxu0 0
      %546 = vmatprep.subr.bf16.mxu0 0
      %547 = vmatpush1.bf16.msra.mxu0 0
      %548 = vmatprep.mubr.bf16.mxu0 0
      %549 = vmatmul.mubr.bf16.gmra.mrb[0].mxu0 %v511
      %v550 = vpop.f32.mrb[0].mxu0
      %v551 = vadd.f32 0.0, %v550
      %v552 = vpop.f32.mrb[0].mxu0
      %v553 = vpop.f32.mrb[0].mxu0
      %v554 = vpop.f32.mrb[0].mxu0
      %555 = vdwg.mxu0
      %557 = vrot.lane.b32.xlu0 %v551, 16
      %v558 = vpop.permute.xlu0 %557
      %v560 = vsel %vm336, %v440, %v558
      %v561 = vld [vmem:[%s4] sm:$0xff]
      %v562 = vld [vmem:[%s4 + $0x8] sm:$0xff]
      %v563 = vld [vmem:[%s4 + $0x10] sm:$0xff]
      %v564 = vld [vmem:[%s4 + $0x18] sm:$0xff]
      %v565 = vpack.c.bf16 %v560, %v560
      %v566 = vpack.c.bf16 %v562, %v561
      %v567 = vpack.c.bf16 %v564, %v563
      %v568 = vld [vmem:[%s5] sm:$0x1]
      %v570 = vlaneseq
      %v571 = vshrl.u32 %v570, 7
      %v572 = vsub.s32 0, %v571
      %v573 = vrot.slane %v568, %v572
      %v576 = vsel %vm251, %v565, 0
      %578 = vmatprep.subr.bf16.mxu0 0
      %579 = vmatpush1.bf16.msra.mxu0 %v566
      %580 = vmatprep.subr.bf16.mxu0 0
      %581 = vmatpush1.bf16.msra.mxu0 %v567
      %582 = vmatprep.subr.bf16.mxu0 0
      %583 = vmatpush1.bf16.msra.mxu0 0
      %584 = vmatprep.subr.bf16.mxu0 0
      %585 = vmatpush1.bf16.msra.mxu0 0
      %586 = vmatprep.subr.bf16.mxu0 0
      %587 = vmatpush1.bf16.msra.mxu0 0
      %588 = vmatprep.subr.bf16.mxu0 0
      %589 = vmatpush1.bf16.msra.mxu0 0
      %590 = vmatprep.subr.bf16.mxu0 0
      %591 = vmatpush1.bf16.msra.mxu0 0
      %592 = vmatprep.subr.bf16.mxu0 0
      %593 = vmatpush1.bf16.msra.mxu0 0
      %594 = vmatprep.subr.bf16.mxu0 0
      %595 = vmatpush1.bf16.msra.mxu0 0
      %596 = vmatprep.subr.bf16.mxu0 0
      %597 = vmatpush1.bf16.msra.mxu0 0
      %598 = vmatprep.subr.bf16.mxu0 0
      %599 = vmatpush1.bf16.msra.mxu0 0
      %600 = vmatprep.subr.bf16.mxu0 0
      %601 = vmatpush1.bf16.msra.mxu0 0
      %602 = vmatprep.subr.bf16.mxu0 0
      %603 = vmatpush1.bf16.msra.mxu0 0
      %604 = vmatprep.subr.bf16.mxu0 0
      %605 = vmatpush1.bf16.msra.mxu0 0
      %606 = vmatprep.subr.bf16.mxu0 0
      %607 = vmatpush1.bf16.msra.mxu0 0
      %608 = vmatprep.subr.bf16.mxu0 0
      %609 = vmatpush1.bf16.msra.mxu0 0
      %610 = vmatprep.mubr.bf16.mxu0 0
      %611 = vmatmul.mubr.bf16.gmra.mrb[0].mxu0 %v576
      %v612 = vpop.f32.mrb[0].mxu0
      %v613 = vadd.f32 %v573, %v612
      %v614 = vpop.f32.mrb[0].mxu0
      %v615 = vpop.f32.mrb[0].mxu0
      %v616 = vpop.f32.mrb[0].mxu0
      %617 = vdwg.mxu0
      %v618 = vadd.f32 %v248, %v613
      %619 = vst.msk [vmem:[%s246] sm:$0xff] %vm251, %v618
      %p620 = scmp.lt.s32.totalorder %s17, 1
      %s621 = scalar_select %p620, %s17, 1
      %s622 = smul.addr %s621, 8
      %s623 = scalar_lea.vmem %s6, %s622
      // Predicated region
      $region45: #{moe_transformer_decoder_forward.5} parent=43 // pred_check
        %p624 = pneg %p166
      $region46: #{moe_transformer_decoder_forward.5} parent=43 // pred_check_branch
        %626 = sbr.rel (%p624) target = $region48
      $region47: #{moe_transformer_decoder_forward.5} parent=43 // pred_region
        _
      $region48: #{moe_transformer_decoder_forward.5} parent=43 // pred_fallthru
        _
    $region44: #{moe_transformer_decoder_forward.5} parent=5 // pred_fallthru
      _
    %p627 = scmp.le.s32.totalorder 2, %s12
    // Predicated region
    $region49: #{moe_transformer_decoder_forward.5} parent=5 // pred_check
      %p628 = pneg %p627
    $region50: #{moe_transformer_decoder_forward.5} parent=5 // pred_check_branch
      %630 = sbr.rel (%p628) target = $region52
    $region51: #{moe_transformer_decoder_forward.5} parent=5 // pred_region
      %s631 = ssub.s32 %s12, 2
      // Predicated region
      $region53: #{moe_transformer_decoder_forward.5} parent=51 // pred_check
        %p632 = pneg %p172
      $region54: #{moe_transformer_decoder_forward.5} parent=51 // pred_check_branch
        %634 = sbr.rel (%p632) target = $region56
      $region55: #{moe_transformer_decoder_forward.5} parent=51 // pred_region
        %p635 = scmp.lt.s32.totalorder %s18, 1
        %s636 = scalar_select %p635, %s18, 1
        %s637 = smul.addr %s636, 8
        %s638 = scalar_lea.vmem %s6, %s637
      $region56: #{moe_transformer_decoder_forward.5} parent=51 // pred_fallthru
        _
    $region52: #{moe_transformer_decoder_forward.5} parent=5 // pred_fallthru
      _
  $region6: #{moe_transformer_decoder_forward.5} parent=0 // loop_footer
    %s16 = sadd.s32 1, %s12
  $region7: #{moe_transformer_decoder_forward.5} parent=0 // loop_footer_branch
    %11 = sbr.rel target = $region3
  $region8: #{moe_transformer_decoder_forward.5} parent=0 // loop_exit
    _

// kernel: custom-call.2
$region0: #{custom-call.2}
  %s0 = inlined_call_operand.vmem [shape: u32[6], index: 0, kind: output, shape index: {}]

// kernel: moe_transformer_decoder_forward.9
$region0: #{moe_transformer_decoder_forward.9}
  #allocation0 [shape = 'u32[]', space=smem, size = 0x4, offset = 0x4, fixed_abs, tag = 'smem constant byte address 0x4 - core index']
  #allocation1 [shape = 'u32[144,128]{1,0:T(1,128)}', space=vmem, size = 0x12000, scoped, tag = 'internal scratch']
  #allocation2 [shape = 's32[1]{0}', space=sflag, size = 0x4, scoped, tag = 'scoped memory for moe_transformer_decoder_forward.9']
  #allocation3 [shape = 'u8[512]{0}', space=smem, size = 0x200, scoped, tag = 'prefetched SMEM operand 0']
  %s0 = inlined_call_operand.vmem [shape: s32[6], index: 0, kind: input, shape index: {}]
  %s1 = inlined_call_operand.vmem [shape: bf16[96,32], index: 1, kind: input, shape index: {}]
  %s2 = inlined_call_operand.vmem [shape: f32[4,32,32], index: 2, kind: input, shape index: {}]
  %s3 = inlined_call_operand.vmem [shape: f32[4,1,32], index: 3, kind: input, shape index: {}]
  %s4 = inlined_call_operand.vmem [shape: f32[4,32,32], index: 4, kind: input, shape index: {}]
  %s5 = inlined_call_operand.vmem [shape: f32[4,1,32], index: 5, kind: input, shape index: {}]
  %s6 = inlined_call_operand.vmem [shape: f32[4,32,32], index: 6, kind: input, shape index: {}]
  %s7 = inlined_call_operand.vmem [shape: f32[4,1,32], index: 7, kind: input, shape index: {}]
  %s8 = inlined_call_operand.vmem [shape: f32[96,32], index: 8, kind: output, shape index: {}]
  %s9 = sld [smem:[#allocation0]]
  $region61: #{moe_transformer_decoder_forward.9} parent=0
    _
  %s11 = ssub.s32 1, %s9
  %s12 = scalar_select 0, %s11, %s9
  %s13 = sshll.u32 %s0, 4
  %s14 = int_to_ptr.vmem [resolvable:$true] %s13
  %16 = dma.vmem_to_smem %s14, 16, [#allocation3], [#allocation2]
  %17 = dma.done [#allocation2], 16
  %18 = sfence
  loop: start=0, step=1, limit=8
  $region2: #{moe_transformer_decoder_forward.9} parent=0 // loop_pre_header
    _
  $region3: #{moe_transformer_decoder_forward.9} parent=0 // loop_header
    %s20 = sphi 0, %s24
    %p21 = scmp.ge.s32.totalorder %s20, 8
    %s30 = sphi 0, %s32
    %s33 = sphi 0, %s30
    %s34 = sphi 0, %s33
    %s50 = sphi 0, %s34
    %s58 = sphi 0, %s60
    %s61 = sphi 0, %s58
    %s62 = sphi 0, %s61
    %s78 = sphi 0, %s62
    %s86 = sphi 0, %s88
    %s89 = sphi 0, %s86
    %s90 = sphi 0, %s89
    %s106 = sphi 0, %s90
    %s114 = sphi 0, %s116
    %s117 = sphi 0, %s114
    %s118 = sphi 0, %s117
    %s134 = sphi 0, %s118
    %s142 = sphi 0, %s144
    %s145 = sphi 0, %s142
    %s146 = sphi 0, %s145
    %s162 = sphi 0, %s146
    %s170 = sphi 0, %s172
    %s173 = sphi 0, %s170
    %s174 = sphi 0, %s173
    %s190 = sphi 0, %s174
    %s198 = sphi 0, %s200
    %s201 = sphi 0, %s198
    %s202 = sphi 0, %s201
    %s218 = sphi 0, %s202
    %s224 = sphi 0, %s226
    %s227 = sphi 0, %s224
    %s228 = sphi 0, %s227
    %s244 = sphi 0, %s228
  $region4: #{moe_transformer_decoder_forward.9} parent=0 // loop_header_branch
    %23 = sbr.rel (%p21) target = $region8
  $region5: #{moe_transformer_decoder_forward.9} parent=0 // loop_body
    %s25 = ssub.s32 %s20, 1
    %s26 = ssub.s32 %s20, 2
    %s27 = sadd.s32 %s20, 1
    %s28 = ssub.s32 %s20, %s27
    %p29 = scmp.eq.s32.totalorder %s28, 0
    %s31 = sadd.s32 %s30, 1
    %s32 = scalar_select %p29, %s30, %s31
    %p35 = pneg %p29
    %p36 = scmp.eq.s32.totalorder %s20, 5
    %p37 = por %p35, %p36
    %p38 = scmp.ne.s32.totalorder %s30, %s33
    %p39 = scmp.eq.s32.totalorder %s20, 0
    %p40 = por %p38, %p39
    %p41 = scmp.ne.s32.totalorder %s30, %s33
    %p42 = scmp.eq.s32.totalorder %s25, 5
    %p43 = por %p41, %p42
    %p44 = scmp.ne.s32.totalorder %s33, %s34
    %p45 = scmp.eq.s32.totalorder %s25, 0
    %p46 = por %p44, %p45
    %p47 = scmp.ne.s32.totalorder %s33, %s34
    %p48 = scmp.eq.s32.totalorder %s26, 5
    %p49 = por %p47, %p48
    %p51 = scmp.ne.s32.totalorder %s34, %s50
    %p52 = scmp.eq.s32.totalorder %s26, 0
    %p53 = por %p51, %p52
    %s54 = sld [smem:[#allocation3 + %s20]]
    %s55 = sld [smem:[#allocation3 + %s27]]
    %s56 = ssub.s32 %s54, %s55
    %p57 = scmp.eq.s32.totalorder %s56, 0
    %s59 = sadd.s32 %s58, 1
    %s60 = scalar_select %p57, %s58, %s59
    %p63 = pneg %p57
    %p64 = scmp.eq.s32.totalorder %s20, 5
    %p65 = por %p63, %p64
    %p66 = scmp.ne.s32.totalorder %s58, %s61
    %p67 = scmp.eq.s32.totalorder %s20, 0
    %p68 = por %p66, %p67
    %p69 = scmp.ne.s32.totalorder %s58, %s61
    %p70 = scmp.eq.s32.totalorder %s25, 5
    %p71 = por %p69, %p70
    %p72 = scmp.ne.s32.totalorder %s61, %s62
    %p73 = scmp.eq.s32.totalorder %s25, 0
    %p74 = por %p72, %p73
    %p75 = scmp.ne.s32.totalorder %s61, %s62
    %p76 = scmp.eq.s32.totalorder %s26, 5
    %p77 = por %p75, %p76
    %p79 = scmp.ne.s32.totalorder %s62, %s78
    %p80 = scmp.eq.s32.totalorder %s26, 0
    %p81 = por %p79, %p80
    %s82 = sld [smem:[#allocation3 + %s20]]
    %s83 = sld [smem:[#allocation3 + %s27]]
    %s84 = ssub.s32 %s82, %s83
    %p85 = scmp.eq.s32.totalorder %s84, 0
    %s87 = sadd.s32 %s86, 1
    %s88 = scalar_select %p85, %s86, %s87
    %p91 = pneg %p85
    %p92 = scmp.eq.s32.totalorder %s20, 5
    %p93 = por %p91, %p92
    %p94 = scmp.ne.s32.totalorder %s86, %s89
    %p95 = scmp.eq.s32.totalorder %s20, 0
    %p96 = por %p94, %p95
    %p97 = scmp.ne.s32.totalorder %s86, %s89
    %p98 = scmp.eq.s32.totalorder %s25, 5
    %p99 = por %p97, %p98
    %p100 = scmp.ne.s32.totalorder %s89, %s90
    %p101 = scmp.eq.s32.totalorder %s25, 0
    %p102 = por %p100, %p101
    %p103 = scmp.ne.s32.totalorder %s89, %s90
    %p104 = scmp.eq.s32.totalorder %s26, 5
    %p105 = por %p103, %p104
    %p107 = scmp.ne.s32.totalorder %s90, %s106
    %p108 = scmp.eq.s32.totalorder %s26, 0
    %p109 = por %p107, %p108
    %s110 = sld [smem:[#allocation3 + %s20]]
    %s111 = sld [smem:[#allocation3 + %s27]]
    %s112 = ssub.s32 %s110, %s111
    %p113 = scmp.eq.s32.totalorder %s112, 0
    %s115 = sadd.s32 %s114, 1
    %s116 = scalar_select %p113, %s114, %s115
    %p119 = pneg %p113
    %p120 = scmp.eq.s32.totalorder %s20, 5
    %p121 = por %p119, %p120
    %p122 = scmp.ne.s32.totalorder %s114, %s117
    %p123 = scmp.eq.s32.totalorder %s20, 0
    %p124 = por %p122, %p123
    %p125 = scmp.ne.s32.totalorder %s114, %s117
    %p126 = scmp.eq.s32.totalorder %s25, 5
    %p127 = por %p125, %p126
    %p128 = scmp.ne.s32.totalorder %s117, %s118
    %p129 = scmp.eq.s32.totalorder %s25, 0
    %p130 = por %p128, %p129
    %p131 = scmp.ne.s32.totalorder %s117, %s118
    %p132 = scmp.eq.s32.totalorder %s26, 5
    %p133 = por %p131, %p132
    %p135 = scmp.ne.s32.totalorder %s118, %s134
    %p136 = scmp.eq.s32.totalorder %s26, 0
    %p137 = por %p135, %p136
    %s138 = sld [smem:[#allocation3 + %s20]]
    %s139 = sld [smem:[#allocation3 + %s27]]
    %s140 = ssub.s32 %s138, %s139
    %p141 = scmp.eq.s32.totalorder %s140, 0
    %s143 = sadd.s32 %s142, 1
    %s144 = scalar_select %p141, %s142, %s143
    %p147 = pneg %p141
    %p148 = scmp.eq.s32.totalorder %s20, 5
    %p149 = por %p147, %p148
    %p150 = scmp.ne.s32.totalorder %s142, %s145
    %p151 = scmp.eq.s32.totalorder %s20, 0
    %p152 = por %p150, %p151
    %p153 = scmp.ne.s32.totalorder %s142, %s145
    %p154 = scmp.eq.s32.totalorder %s25, 5
    %p155 = por %p153, %p154
    %p156 = scmp.ne.s32.totalorder %s145, %s146
    %p157 = scmp.eq.s32.totalorder %s25, 0
    %p158 = por %p156, %p157
    %p159 = scmp.ne.s32.totalorder %s145, %s146
    %p160 = scmp.eq.s32.totalorder %s26, 5
    %p161 = por %p159, %p160
    %p163 = scmp.ne.s32.totalorder %s146, %s162
    %p164 = scmp.eq.s32.totalorder %s26, 0
    %p165 = por %p163, %p164
    %s166 = sld [smem:[#allocation3 + %s20]]
    %s167 = sld [smem:[#allocation3 + %s27]]
    %s168 = ssub.s32 %s166, %s167
    %p169 = scmp.eq.s32.totalorder %s168, 0
    %s171 = sadd.s32 %s170, 1
    %s172 = scalar_select %p169, %s170, %s171
    %p175 = pneg %p169
    %p176 = scmp.eq.s32.totalorder %s20, 5
    %p177 = por %p175, %p176
    %p178 = scmp.ne.s32.totalorder %s170, %s173
    %p179 = scmp.eq.s32.totalorder %s20, 0
    %p180 = por %p178, %p179
    %p181 = scmp.ne.s32.totalorder %s170, %s173
    %p182 = scmp.eq.s32.totalorder %s25, 5
    %p183 = por %p181, %p182
    %p184 = scmp.ne.s32.totalorder %s173, %s174
    %p185 = scmp.eq.s32.totalorder %s25, 0
    %p186 = por %p184, %p185
    %p187 = scmp.ne.s32.totalorder %s173, %s174
    %p188 = scmp.eq.s32.totalorder %s26, 5
    %p189 = por %p187, %p188
    %p191 = scmp.ne.s32.totalorder %s174, %s190
    %p192 = scmp.eq.s32.totalorder %s26, 0
    %p193 = por %p191, %p192
    %s194 = sld [smem:[#allocation3 + %s20]]
    %s195 = sld [smem:[#allocation3 + %s27]]
    %s196 = ssub.s32 %s194, %s195
    %p197 = scmp.eq.s32.totalorder %s196, 0
    %s199 = sadd.s32 %s198, 1
    %s200 = scalar_select %p197, %s198, %s199
    %p203 = pneg %p197
    %p204 = scmp.eq.s32.totalorder %s20, 5
    %p205 = por %p203, %p204
    %p206 = scmp.ne.s32.totalorder %s198, %s201
    %p207 = scmp.eq.s32.totalorder %s20, 0
    %p208 = por %p206, %p207
    %p209 = scmp.ne.s32.totalorder %s198, %s201
    %p210 = scmp.eq.s32.totalorder %s25, 5
    %p211 = por %p209, %p210
    %p212 = scmp.ne.s32.totalorder %s201, %s202
    %p213 = scmp.eq.s32.totalorder %s25, 0
    %p214 = por %p212, %p213
    %p215 = scmp.ne.s32.totalorder %s201, %s202
    %p216 = scmp.eq.s32.totalorder %s26, 5
    %p217 = por %p215, %p216
    %p219 = scmp.ne.s32.totalorder %s202, %s218
    %p220 = scmp.eq.s32.totalorder %s26, 0
    %p221 = por %p219, %p220
    %s222 = ssub.s32 %s20, %s27
    %p223 = scmp.eq.s32.totalorder %s222, 0
    %s225 = sadd.s32 %s224, 1
    %s226 = scalar_select %p223, %s224, %s225
    %p229 = pneg %p223
    %p230 = scmp.eq.s32.totalorder %s20, 5
    %p231 = por %p229, %p230
    %p232 = scmp.ne.s32.totalorder %s224, %s227
    %p233 = scmp.eq.s32.totalorder %s20, 0
    %p234 = por %p232, %p233
    %p235 = scmp.ne.s32.totalorder %s224, %s227
    %p236 = scmp.eq.s32.totalorder %s25, 5
    %p237 = por %p235, %p236
    %p238 = scmp.ne.s32.totalorder %s227, %s228
    %p239 = scmp.eq.s32.totalorder %s25, 0
    %p240 = por %p238, %p239
    %p241 = scmp.ne.s32.totalorder %s227, %s228
    %p242 = scmp.eq.s32.totalorder %s26, 5
    %p243 = por %p241, %p242
    %p245 = scmp.ne.s32.totalorder %s228, %s244
    %p246 = scmp.eq.s32.totalorder %s26, 0
    %p247 = por %p245, %p246
    %p248 = scmp.le.s32.totalorder 1, %s20
    %p249 = scmp.lt.s32.totalorder %s20, 7
    %p250 = pnand %p248, %p249
    %p251 = pneg %p250
    // Predicated region
    $region9: #{moe_transformer_decoder_forward.9} parent=5 // pred_check
      _
    $region10: #{moe_transformer_decoder_forward.9} parent=5 // pred_check_branch
      %253 = sbr.rel (%p250) target = $region12
    $region11: #{moe_transformer_decoder_forward.9} parent=5 // pred_region
      %s254 = ssub.s32 %s20, 1
    $region12: #{moe_transformer_decoder_forward.9} parent=5 // pred_fallthru
      _
    %p255 = scmp.lt.s32.totalorder %s20, 6
    // Predicated region
    $region13: #{moe_transformer_decoder_forward.9} parent=5 // pred_check
      %p256 = pneg %p255
    $region14: #{moe_transformer_decoder_forward.9} parent=5 // pred_check_branch
      %258 = sbr.rel (%p256) target = $region16
    $region15: #{moe_transformer_decoder_forward.9} parent=5 // pred_region
      // Predicated region
      $region17: #{moe_transformer_decoder_forward.9} parent=15 // pred_check
        %p259 = pneg %p40
      $region18: #{moe_transformer_decoder_forward.9} parent=15 // pred_check_branch
        %261 = sbr.rel (%p259) target = $region20
      $region19: #{moe_transformer_decoder_forward.9} parent=15 // pred_region
        %s262 = smul.u32 2, %s20
        %p263 = scmp.lt.s32.totalorder %s262, 11
        %s264 = scalar_select %p263, %s262, 11
        %s265 = smul.addr %s264, 4
        %s266 = scalar_lea.vmem %s1, %s265
        %s267 = smul.u32 2, %s20
      $region20: #{moe_transformer_decoder_forward.9} parent=15 // pred_fallthru
        _
      // Predicated region
      $region21: #{moe_transformer_decoder_forward.9} parent=15 // pred_check
        %p268 = pneg %p68
      $region22: #{moe_transformer_decoder_forward.9} parent=15 // pred_check_branch
        %270 = sbr.rel (%p268) target = $region24
      $region23: #{moe_transformer_decoder_forward.9} parent=15 // pred_region
        %s271 = sld [smem:[#allocation3 + %s20]]
        %p272 = scmp.lt.s32.totalorder %s271, 3
        %s273 = scalar_select %p272, %s271, 3
        %s274 = smul.addr %s273, 4
        %s275 = smul.addr %s274, 8
        %s276 = scalar_lea.vmem %s2, %s275
        %s277 = sld [smem:[#allocation3 + %s20]]
      $region24: #{moe_transformer_decoder_forward.9} parent=15 // pred_fallthru
        _
      // Predicated region
      $region25: #{moe_transformer_decoder_forward.9} parent=15 // pred_check
        %p278 = pneg %p96
      $region26: #{moe_transformer_decoder_forward.9} parent=15 // pred_check_branch
        %280 = sbr.rel (%p278) target = $region28
      $region27: #{moe_transformer_decoder_forward.9} parent=15 // pred_region
        %s281 = sld [smem:[#allocation3 + %s20]]
        %p282 = scmp.lt.s32.totalorder %s281, 3
        %s283 = scalar_select %p282, %s281, 3
        %s284 = scalar_lea.vmem %s3, %s283
        %s285 = sld [smem:[#allocation3 + %s20]]
      $region28: #{moe_transformer_decoder_forward.9} parent=15 // pred_fallthru
        _
      // Predicated region
      $region29: #{moe_transformer_decoder_forward.9} parent=15 // pred_check
        %p286 = pneg %p124
      $region30: #{moe_transformer_decoder_forward.9} parent=15 // pred_check_branch
        %288 = sbr.rel (%p286) target = $region32
      $region31: #{moe_transformer_decoder_forward.9} parent=15 // pred_region
        %s289 = sld [smem:[#allocation3 + %s20]]
        %p290 = scmp.lt.s32.totalorder %s289, 3
        %s291 = scalar_select %p290, %s289, 3
        %s292 = smul.addr %s291, 4
        %s293 = smul.addr %s292, 8
        %s294 = scalar_lea.vmem %s4, %s293
        %s295 = sld [smem:[#allocation3 + %s20]]
      $region32: #{moe_transformer_decoder_forward.9} parent=15 // pred_fallthru
        _
      // Predicated region
      $region33: #{moe_transformer_decoder_forward.9} parent=15 // pred_check
        %p296 = pneg %p152
      $region34: #{moe_transformer_decoder_forward.9} parent=15 // pred_check_branch
        %298 = sbr.rel (%p296) target = $region36
      $region35: #{moe_transformer_decoder_forward.9} parent=15 // pred_region
        %s299 = sld [smem:[#allocation3 + %s20]]
        %p300 = scmp.lt.s32.totalorder %s299, 3
        %s301 = scalar_select %p300, %s299, 3
        %s302 = scalar_lea.vmem %s5, %s301
        %s303 = sld [smem:[#allocation3 + %s20]]
      $region36: #{moe_transformer_decoder_forward.9} parent=15 // pred_fallthru
        _
      // Predicated region
      $region37: #{moe_transformer_decoder_forward.9} parent=15 // pred_check
        %p304 = pneg %p180
      $region38: #{moe_transformer_decoder_forward.9} parent=15 // pred_check_branch
        %306 = sbr.rel (%p304) target = $region40
      $region39: #{moe_transformer_decoder_forward.9} parent=15 // pred_region
        %s307 = sld [smem:[#allocation3 + %s20]]
        %p308 = scmp.lt.s32.totalorder %s307, 3
        %s309 = scalar_select %p308, %s307, 3
        %s310 = smul.addr %s309, 4
        %s311 = smul.addr %s310, 8
        %s312 = scalar_lea.vmem %s6, %s311
        %s313 = sld [smem:[#allocation3 + %s20]]
      $region40: #{moe_transformer_decoder_forward.9} parent=15 // pred_fallthru
        _
      // Predicated region
      $region41: #{moe_transformer_decoder_forward.9} parent=15 // pred_check
        %p314 = pneg %p208
      $region42: #{moe_transformer_decoder_forward.9} parent=15 // pred_check_branch
        %316 = sbr.rel (%p314) target = $region44
      $region43: #{moe_transformer_decoder_forward.9} parent=15 // pred_region
        %s317 = sld [smem:[#allocation3 + %s20]]
        %p318 = scmp.lt.s32.totalorder %s317, 3
        %s319 = scalar_select %p318, %s317, 3
        %s320 = scalar_lea.vmem %s7, %s319
        %s321 = sld [smem:[#allocation3 + %s20]]
      $region44: #{moe_transformer_decoder_forward.9} parent=15 // pred_fallthru
        _
    $region16: #{moe_transformer_decoder_forward.9} parent=5 // pred_fallthru
      _
    %p322 = scmp.le.s32.totalorder 1, %s20
    %p323 = scmp.lt.s32.totalorder %s20, 7
    %p324 = pnand %p322, %p323
    %p325 = pneg %p324
    // Predicated region
    $region45: #{moe_transformer_decoder_forward.9} parent=5 // pred_check
      _
    $region46: #{moe_transformer_decoder_forward.9} parent=5 // pred_check_branch
      %327 = sbr.rel (%p324) target = $region48
    $region47: #{moe_transformer_decoder_forward.9} parent=5 // pred_region
      %s328 = ssub.s32 %s20, 1
      %s329 = smul.u32 2, %s25
      %p330 = scmp.lt.s32.totalorder %s329, 11
      %s331 = scalar_select %p330, %s329, 11
      %s332 = smul.addr %s331, 4
      %s333 = scalar_lea.vmem %s1, %s332
      %p334 = pneg %p46
      %p335 = pneg %p43
      %s336 = sld [smem:[#allocation3 + %s25]]
      %p337 = scmp.lt.s32.totalorder %s336, 3
      %s338 = scalar_select %p337, %s336, 3
      %s339 = smul.addr %s338, 4
      %s340 = smul.addr %s339, 8
      %s341 = scalar_lea.vmem %s2, %s340
      %p342 = pneg %p74
      %p343 = pneg %p71
      %s344 = sld [smem:[#allocation3 + %s25]]
      %p345 = scmp.lt.s32.totalorder %s344, 3
      %s346 = scalar_select %p345, %s344, 3
      %s347 = scalar_lea.vmem %s3, %s346
      %p348 = pneg %p102
      %p349 = pneg %p99
      %s350 = sld [smem:[#allocation3 + %s25]]
      %p351 = scmp.lt.s32.totalorder %s350, 3
      %s352 = scalar_select %p351, %s350, 3
      %s353 = smul.addr %s352, 4
      %s354 = smul.addr %s353, 8
      %s355 = scalar_lea.vmem %s4, %s354
      %p356 = pneg %p130
      %p357 = pneg %p127
      %s358 = sld [smem:[#allocation3 + %s25]]
      %p359 = scmp.lt.s32.totalorder %s358, 3
      %s360 = scalar_select %p359, %s358, 3
      %s361 = scalar_lea.vmem %s5, %s360
      %p362 = pneg %p158
      %p363 = pneg %p155
      %s364 = sld [smem:[#allocation3 + %s25]]
      %p365 = scmp.lt.s32.totalorder %s364, 3
      %s366 = scalar_select %p365, %s364, 3
      %s367 = smul.addr %s366, 4
      %s368 = smul.addr %s367, 8
      %s369 = scalar_lea.vmem %s6, %s368
      %p370 = pneg %p186
      %p371 = pneg %p183
      %s372 = sld [smem:[#allocation3 + %s25]]
      %p373 = scmp.lt.s32.totalorder %s372, 3
      %s374 = scalar_select %p373, %s372, 3
      %s375 = scalar_lea.vmem %s7, %s374
      %p376 = pneg %p214
      %p377 = pneg %p211
      %p378 = pneg %p240
      %p379 = pneg %p237
      %s380 = smul.u32 2, %s25
      %p381 = scmp.lt.s32.totalorder %s380, 11
      %s382 = scalar_select %p381, %s380, 11
      %s383 = smul.addr %s382, 8
      %s384 = scalar_lea.vmem %s8, %s383
      %s385 = smul.u32 2, %s25
      %p386 = scmp.lt.s32.totalorder %s385, 11
      %s387 = scalar_select %p386, %s385, 11
      %s388 = smul.addr %s387, 4
      %s389 = scalar_lea.vmem %s1, %s388
      %s390 = smul.u32 2, %s25
      %s391 = sld [smem:[#allocation3 + %s25]]
      %p392 = scmp.lt.s32.totalorder %s391, 3
      %s393 = scalar_select %p392, %s391, 3
      %s394 = smul.addr %s393, 4
      %s395 = smul.addr %s394, 8
      %s396 = scalar_lea.vmem %s2, %s395
      %s397 = sld [smem:[#allocation3 + %s25]]
      %s398 = sld [smem:[#allocation3 + %s25]]
      %p399 = scmp.lt.s32.totalorder %s398, 3
      %s400 = scalar_select %p399, %s398, 3
      %s401 = scalar_lea.vmem %s3, %s400
      %s402 = sld [smem:[#allocation3 + %s25]]
      %s403 = sld [smem:[#allocation3 + %s25]]
      %p404 = scmp.lt.s32.totalorder %s403, 3
      %s405 = scalar_select %p404, %s403, 3
      %s406 = smul.addr %s405, 4
      %s407 = smul.addr %s406, 8
      %s408 = scalar_lea.vmem %s4, %s407
      %s409 = sld [smem:[#allocation3 + %s25]]
      %s410 = sld [smem:[#allocation3 + %s25]]
      %p411 = scmp.lt.s32.totalorder %s410, 3
      %s412 = scalar_select %p411, %s410, 3
      %s413 = scalar_lea.vmem %s5, %s412
      %s414 = sld [smem:[#allocation3 + %s25]]
      %s415 = sld [smem:[#allocation3 + %s25]]
      %p416 = scmp.lt.s32.totalorder %s415, 3
      %s417 = scalar_select %p416, %s415, 3
      %s418 = smul.addr %s417, 4
      %s419 = smul.addr %s418, 8
      %s420 = scalar_lea.vmem %s6, %s419
      %s421 = sld [smem:[#allocation3 + %s25]]
      %s422 = sld [smem:[#allocation3 + %s25]]
      %p423 = scmp.lt.s32.totalorder %s422, 3
      %s424 = scalar_select %p423, %s422, 3
      %s425 = scalar_lea.vmem %s7, %s424
      %s426 = sld [smem:[#allocation3 + %s25]]
      %s427 = smul.u32 2, %s25
      %p428 = scmp.lt.s32.totalorder %s427, 11
      %s429 = scalar_select %p428, %s427, 11
      %s430 = smul.addr %s429, 8
      %s431 = scalar_lea.vmem %s8, %s430
      %s432 = smul.u32 2, %s25
      %v434 = vld [vmem:[%s389] sm:$0xf]
      %v435 = vld [vmem:[%s389 + $0x4] sm:$0xf]
      %v436 = vld [vmem:[%s396] sm:$0xff]
      %v437 = vld [vmem:[%s396 + $0x8] sm:$0xff]
      %v438 = vld [vmem:[%s396 + $0x10] sm:$0xff]
      %v439 = vld [vmem:[%s396 + $0x18] sm:$0xff]
      %v440 = vpack.c.bf16 %v437, %v436
      %v441 = vpack.c.bf16 %v439, %v438
      %v442 = vld [vmem:[%s401] sm:$0x1]
      %v444 = vlaneseq
      %v445 = vshrl.u32 %v444, 7
      %v446 = vsub.s32 0, %v445
      %v447 = vrot.slane %v442, %v446
      %v451 = vunpack.c.l.b16 %v434
      %v452 = vunpack.c.l.b16 %v435
      %v453 = vpack.c.b16 %v452, %v451
      %vm454 = vcmask 261120
      %v456 = vsel %vm454, %v453, 0
      %458 = vmatprep.subr.bf16.mxu0 0
      %459 = vmatpush1.bf16.msra.mxu0 %v440
      %460 = vmatprep.subr.bf16.mxu0 0
      %461 = vmatpush1.bf16.msra.mxu0 %v441
      %462 = vmatprep.subr.bf16.mxu0 0
      %463 = vmatpush1.bf16.msra.mxu0 0
      %464 = vmatprep.subr.bf16.mxu0 0
      %465 = vmatpush1.bf16.msra.mxu0 0
      %466 = vmatprep.subr.bf16.mxu0 0
      %467 = vmatpush1.bf16.msra.mxu0 0
      %468 = vmatprep.subr.bf16.mxu0 0
      %469 = vmatpush1.bf16.msra.mxu0 0
      %470 = vmatprep.subr.bf16.mxu0 0
      %471 = vmatpush1.bf16.msra.mxu0 0
      %472 = vmatprep.subr.bf16.mxu0 0
      %473 = vmatpush1.bf16.msra.mxu0 0
      %474 = vmatprep.subr.bf16.mxu0 0
      %475 = vmatpush1.bf16.msra.mxu0 0
      %476 = vmatprep.subr.bf16.mxu0 0
      %477 = vmatpush1.bf16.msra.mxu0 0
      %478 = vmatprep.subr.bf16.mxu0 0
      %479 = vmatpush1.bf16.msra.mxu0 0
      %480 = vmatprep.subr.bf16.mxu0 0
      %481 = vmatpush1.bf16.msra.mxu0 0
      %482 = vmatprep.subr.bf16.mxu0 0
      %483 = vmatpush1.bf16.msra.mxu0 0
      %484 = vmatprep.subr.bf16.mxu0 0
      %485 = vmatpush1.bf16.msra.mxu0 0
      %486 = vmatprep.subr.bf16.mxu0 0
      %487 = vmatpush1.bf16.msra.mxu0 0
      %488 = vmatprep.subr.bf16.mxu0 0
      %489 = vmatpush1.bf16.msra.mxu0 0
      %490 = vmatprep.mubr.bf16.mxu0 0
      %491 = vmatmul.mubr.bf16.gmra.mrb[0].mxu0 %v456
      %v492 = vpop.f32.mrb[0].mxu0
      %v493 = vadd.f32 %v447, %v492
      %v494 = vpop.f32.mrb[0].mxu0
      %v495 = vpop.f32.mrb[0].mxu0
      %v496 = vadd.f32 %v447, %v495
      %v497 = vpop.f32.mrb[0].mxu0
      %498 = vdwg.mxu0
      %v499 = vxor.u32 %v493, 2147483648
      %v500 = vxor.u32 %v496, 2147483648
      %v501 = vmul.f32 %v499, 1.442695
      %v502 = vpow.pop %v501
      %v503 = vmul.f32 %v500, 1.442695
      %v504 = vpow.pop %v503
      %v505 = vadd.f32 %v502, 1.0
      %v506 = vadd.f32 %v504, 1.0
      %v507 = vrcp.pop %v505
      %v508 = vmul.f32 1.0, %v507
      %v509 = vrcp.pop %v506
      %v510 = vmul.f32 1.0, %v509
      %v511 = vmul.f32 %v493, %v508
      %v512 = vmul.f32 %v496, %v510
      %v513 = vld [vmem:[%s408] sm:$0xff]
      %v514 = vld [vmem:[%s408 + $0x8] sm:$0xff]
      %v515 = vld [vmem:[%s408 + $0x10] sm:$0xff]
      %v516 = vld [vmem:[%s408 + $0x18] sm:$0xff]
      %v517 = vpack.c.bf16 %v514, %v513
      %v518 = vpack.c.bf16 %v516, %v515
      %v519 = vld [vmem:[%s413] sm:$0x1]
      %v521 = vlaneseq
      %v522 = vshrl.u32 %v521, 7
      %v523 = vsub.s32 0, %v522
      %v524 = vrot.slane %v519, %v523
      %526 = vmatprep.subr.bf16.mxu0 0
      %527 = vmatpush1.bf16.msra.mxu0 %v517
      %528 = vmatprep.subr.bf16.mxu0 0
      %529 = vmatpush1.bf16.msra.mxu0 %v518
      %530 = vmatprep.subr.bf16.mxu0 0
      %531 = vmatpush1.bf16.msra.mxu0 0
      %532 = vmatprep.subr.bf16.mxu0 0
      %533 = vmatpush1.bf16.msra.mxu0 0
      %534 = vmatprep.subr.bf16.mxu0 0
      %535 = vmatpush1.bf16.msra.mxu0 0
      %536 = vmatprep.subr.bf16.mxu0 0
      %537 = vmatpush1.bf16.msra.mxu0 0
      %538 = vmatprep.subr.bf16.mxu0 0
      %539 = vmatpush1.bf16.msra.mxu0 0
      %540 = vmatprep.subr.bf16.mxu0 0
      %541 = vmatpush1.bf16.msra.mxu0 0
      %542 = vmatprep.subr.bf16.mxu0 0
      %543 = vmatpush1.bf16.msra.mxu0 0
      %544 = vmatprep.subr.bf16.mxu0 0
      %545 = vmatpush1.bf16.msra.mxu0 0
      %546 = vmatprep.subr.bf16.mxu0 0
      %547 = vmatpush1.bf16.msra.mxu0 0
      %548 = vmatprep.subr.bf16.mxu0 0
      %549 = vmatpush1.bf16.msra.mxu0 0
      %550 = vmatprep.subr.bf16.mxu0 0
      %551 = vmatpush1.bf16.msra.mxu0 0
      %552 = vmatprep.subr.bf16.mxu0 0
      %553 = vmatpush1.bf16.msra.mxu0 0
      %554 = vmatprep.subr.bf16.mxu0 0
      %555 = vmatpush1.bf16.msra.mxu0 0
      %556 = vmatprep.subr.bf16.mxu0 0
      %557 = vmatpush1.bf16.msra.mxu0 0
      %558 = vmatprep.mubr.bf16.mxu0 0
      %559 = vmatmul.mubr.bf16.gmra.mrb[0].mxu0 %v456
      %v560 = vpop.f32.mrb[0].mxu0
      %v561 = vadd.f32 %v524, %v560
      %v562 = vpop.f32.mrb[0].mxu0
      %v563 = vpop.f32.mrb[0].mxu0
      %v564 = vadd.f32 %v524, %v563
      %v565 = vpop.f32.mrb[0].mxu0
      %566 = vdwg.mxu0
      %v567 = vmul.f32 %v511, %v561
      %v568 = vmul.f32 %v512, %v564
      %v569 = vld [vmem:[%s420] sm:$0xff]
      %v570 = vld [vmem:[%s420 + $0x8] sm:$0xff]
      %v571 = vld [vmem:[%s420 + $0x10] sm:$0xff]
      %v572 = vld [vmem:[%s420 + $0x18] sm:$0xff]
      %v573 = vpack.c.bf16 %v568, %v567
      %v574 = vpack.c.bf16 %v570, %v569
      %v575 = vpack.c.bf16 %v572, %v571
      %v576 = vld [vmem:[%s425] sm:$0x1]
      %v578 = vlaneseq
      %v579 = vshrl.u32 %v578, 7
      %v580 = vsub.s32 0, %v579
      %v581 = vrot.slane %v576, %v580
      %v584 = vsel %vm454, %v573, 0
      %586 = vmatprep.subr.bf16.mxu0 0
      %587 = vmatpush1.bf16.msra.mxu0 %v574
      %588 = vmatprep.subr.bf16.mxu0 0
      %589 = vmatpush1.bf16.msra.mxu0 %v575
      %590 = vmatprep.subr.bf16.mxu0 0
      %591 = vmatpush1.bf16.msra.mxu0 0
      %592 = vmatprep.subr.bf16.mxu0 0
      %593 = vmatpush1.bf16.msra.mxu0 0
      %594 = vmatprep.subr.bf16.mxu0 0
      %595 = vmatpush1.bf16.msra.mxu0 0
      %596 = vmatprep.subr.bf16.mxu0 0
      %597 = vmatpush1.bf16.msra.mxu0 0
      %598 = vmatprep.subr.bf16.mxu0 0
      %599 = vmatpush1.bf16.msra.mxu0 0
      %600 = vmatprep.subr.bf16.mxu0 0
      %601 = vmatpush1.bf16.msra.mxu0 0
      %602 = vmatprep.subr.bf16.mxu0 0
      %603 = vmatpush1.bf16.msra.mxu0 0
      %604 = vmatprep.subr.bf16.mxu0 0
      %605 = vmatpush1.bf16.msra.mxu0 0
      %606 = vmatprep.subr.bf16.mxu0 0
      %607 = vmatpush1.bf16.msra.mxu0 0
      %608 = vmatprep.subr.bf16.mxu0 0
      %609 = vmatpush1.bf16.msra.mxu0 0
      %610 = vmatprep.subr.bf16.mxu0 0
      %611 = vmatpush1.bf16.msra.mxu0 0
      %612 = vmatprep.subr.bf16.mxu0 0
      %613 = vmatpush1.bf16.msra.mxu0 0
      %614 = vmatprep.subr.bf16.mxu0 0
      %615 = vmatpush1.bf16.msra.mxu0 0
      %616 = vmatprep.subr.bf16.mxu0 0
      %617 = vmatpush1.bf16.msra.mxu0 0
      %618 = vmatprep.mubr.bf16.mxu0 0
      %619 = vmatmul.mubr.bf16.gmra.mrb[0].mxu0 %v584
      %v620 = vpop.f32.mrb[0].mxu0
      %v621 = vadd.f32 %v581, %v620
      %v622 = vpop.f32.mrb[0].mxu0
      %v623 = vpop.f32.mrb[0].mxu0
      %v624 = vadd.f32 %v581, %v623
      %v625 = vpop.f32.mrb[0].mxu0
      %626 = vdwg.mxu0
      %627 = vst.msk [vmem:[%s431] sm:$0xff] %vm454, %v621
      %628 = vst.msk [vmem:[%s431 + $0x8] sm:$0xff] %vm454, %v624
      %s629 = smul.u32 2, %s25
      %p630 = scmp.lt.s32.totalorder %s629, 11
      %s631 = scalar_select %p630, %s629, 11
      %s632 = smul.addr %s631, 8
      %s633 = scalar_lea.vmem %s8, %s632
      // Predicated region
      $region49: #{moe_transformer_decoder_forward.9} parent=47 // pred_check
        %p634 = pneg %p237
      $region50: #{moe_transformer_decoder_forward.9} parent=47 // pred_check_branch
        %636 = sbr.rel (%p634) target = $region52
      $region51: #{moe_transformer_decoder_forward.9} parent=47 // pred_region
        %s637 = smul.u32 2, %s25
      $region52: #{moe_transformer_decoder_forward.9} parent=47 // pred_fallthru
        _
    $region48: #{moe_transformer_decoder_forward.9} parent=5 // pred_fallthru
      _
    %p638 = scmp.le.s32.totalorder 2, %s20
    // Predicated region
    $region53: #{moe_transformer_decoder_forward.9} parent=5 // pred_check
      %p639 = pneg %p638
    $region54: #{moe_transformer_decoder_forward.9} parent=5 // pred_check_branch
      %641 = sbr.rel (%p639) target = $region56
    $region55: #{moe_transformer_decoder_forward.9} parent=5 // pred_region
      %s642 = ssub.s32 %s20, 2
      // Predicated region
      $region57: #{moe_transformer_decoder_forward.9} parent=55 // pred_check
        %p643 = pneg %p243
      $region58: #{moe_transformer_decoder_forward.9} parent=55 // pred_check_branch
        %645 = sbr.rel (%p643) target = $region60
      $region59: #{moe_transformer_decoder_forward.9} parent=55 // pred_region
        %s646 = smul.u32 2, %s26
        %p647 = scmp.lt.s32.totalorder %s646, 11
        %s648 = scalar_select %p647, %s646, 11
        %s649 = smul.addr %s648, 8
        %s650 = scalar_lea.vmem %s8, %s649
      $region60: #{moe_transformer_decoder_forward.9} parent=55 // pred_fallthru
        _
    $region56: #{moe_transformer_decoder_forward.9} parent=5 // pred_fallthru
      _
  $region6: #{moe_transformer_decoder_forward.9} parent=0 // loop_footer
    %s24 = sadd.s32 1, %s20
  $region7: #{moe_transformer_decoder_forward.9} parent=0 // loop_footer_branch
    %19 = sbr.rel target = $region3
  $region8: #{moe_transformer_decoder_forward.9} parent=0 // loop_exit
    _

</llo_original>
